<compile_context>
chip_gen: v6e
topology: v6e:2x2x1
jax: 0.10.0
libtpu: 0.0.40
codegen_flags: <defaults>
</compile_context>

<pallas_src>
import functools

import jax
import jax.numpy as jnp
from jax.experimental import pallas as pl
from jax.experimental.pallas import tpu as pltpu


# --------------------------- Pallas kernel ----------------------------------
def _toroidal_splat_kernel(embedding_dim, scal_ref, center_ref, ec_ref,
                           pts_ref, out_ref):
    # Points arrive in native (tile_n, D) layout; transpose in-kernel so the
    # point axis is lane-dense for all per-point math and the output store.
    pts = jnp.transpose(pts_ref[...].astype(jnp.float32))   # (D, tile_n)
    center = center_ref[...].astype(jnp.float32)             # (D, 1)
    ec = ec_ref[...].astype(jnp.float32)                     # (D, 1) = exit - center

    abs_major = scal_ref[0]    # |major_radius|
    abs_minor = scal_ref[1]    # |minor_radius|
    inv_denom = scal_ref[2]    # 1 / (2*|minor_radius|^2 + 1e-8)
    torus_coef = scal_ref[3]   # sig(amplitude) * sig(torus_weight)
    worm_coef = scal_ref[4]    # sig(amplitude) * sig(wormhole_weight) * sig(wormhole_strength)
    half_ec_sq = scal_ref[5]   # 0.5 * ||wormhole_exit - center||^2

    rel = pts - center                                       # (D, tn)
    rel2 = rel * rel

    # ---- torus distance (per point / lane) ----
    if embedding_dim > 2:
        xy_sq = rel2[0:1, :] + rel2[1:2, :]                  # (1, tn)
        z_sq = jnp.sum(rel2[2:, :], axis=0, keepdims=True)   # direct sum: no cancellation
        full_sq = xy_sq + z_sq                               # ||p - c||^2
        xy_dist = jnp.sqrt(xy_sq + 1e-8)
        major_circle = xy_dist - abs_major                   # abs dropped: only squared
        minor_dist = jnp.sqrt(major_circle * major_circle + z_sq + 1e-8)
        torus_dist = minor_dist - abs_minor                  # abs dropped: only squared
    elif embedding_dim == 2:
        xy_sq = rel2[0:1, :] + rel2[1:2, :]
        full_sq = xy_sq
        xy_dist = jnp.sqrt(xy_sq + 1e-8)
        major_circle = jnp.abs(xy_dist - abs_major)          # abs needed here
        torus_dist = major_circle - abs_minor                # abs dropped: only squared
    else:  # embedding_dim == 1
        full_sq = rel2[0:1, :]
        torus_dist = jnp.sqrt(full_sq) - abs_major           # abs dropped: only squared

    torus_attention = jnp.exp(-(torus_dist * torus_dist) * inv_denom)

    # ---- wormhole affinity ----
    #   exp(-0.5*||p-c||^2) * exp(-0.5*||p-e||^2)
    # = exp( (p-c).ec - ||p-c||^2 - 0.5*||ec||^2 ),   ec = e - c
    # (argument is always <= 0, so no overflow even for far-apart exits)
    rel_dot_ec = jnp.sum(rel * ec, axis=0, keepdims=True)    # (1, tn)
    wormhole_connection = jnp.exp(rel_dot_ec - full_sq - half_ec_sq)

    out_ref[...] = (torus_coef * torus_attention
                    + worm_coef * wormhole_connection).astype(out_ref.dtype)


# ------------------ pure-JAX reference / small-batch fallback ----------------
def _ref_point(point, params):
    """Literal translation of ToroidalSplat.forward for a single (D,) point."""
    center = params["center"]
    rel = point - center
    d = rel.shape[0]
    if d >= 2:
        xy_dist = jnp.sqrt(rel[0] ** 2 + rel[1] ** 2 + 1e-8)
        major_circle = jnp.abs(xy_dist - jnp.abs(params["major_radius"]))
        if d > 2:
            z = jnp.sqrt(jnp.sum(rel[2:] ** 2))
            minor = jnp.sqrt(major_circle ** 2 + z ** 2 + 1e-8)
        else:
            minor = major_circle
        torus_dist = jnp.abs(minor - jnp.abs(params["minor_radius"]))
    else:
        torus_dist = jnp.abs(jnp.sqrt(jnp.sum(rel ** 2))
                             - jnp.abs(params["major_radius"]))
    torus_att = jnp.exp(-torus_dist ** 2 /
                        (2.0 * jnp.abs(params["minor_radius"]) ** 2 + 1e-8))
    cd = jnp.sqrt(jnp.sum(rel ** 2))
    wd = jnp.sqrt(jnp.sum((point - params["wormhole_exit"]) ** 2))
    wconn = (jnp.exp(-0.5 * cd ** 2) * jnp.exp(-0.5 * wd ** 2)
             * jax.nn.sigmoid(params["wormhole_strength"]))
    combined = (jax.nn.sigmoid(params["torus_weight"]) * torus_att
                + jax.nn.sigmoid(params["wormhole_weight"]) * wconn)
    return jax.nn.sigmoid(params["amplitude"]) * combined


def _forward_reference(points, params):
    return jax.vmap(lambda p: _ref_point(p, params))(points)


# ------------------------------- wrapper -------------------------------------
def _tensorcores_per_chip():
    """Best-effort TensorCore count per chip (2 only on TPU v7x)."""
    try:
        kind = jax.devices()[0].device_kind.lower()
    except Exception:
        return 1
    return 2 if "v7" in kind else 1


def _choose_tile_n(n, bytes_per_point, max_tile_n, bytes_target):
    n_cap = (n // 128) * 128                      # largest legal tile: 128-mult, <= n
    tile = (bytes_target // max(bytes_per_point, 1)) // 128 * 128
    tile = int(max(128, min(tile, max_tile_n, n_cap)))
    # Only shrink tiles below the byte target when a second TensorCore (v7x)
    # would otherwise sit idle; v5e/v6e keep the largest tile.
    cores = _tensorcores_per_chip()
    if cores > 1 and pl.cdiv(n, tile) < cores:
        tile = int(max(128, ((n_cap // cores) // 128) * 128))
    return tile


def toroidal_splat_forward(points, params, *, min_kernel_points=1024,
                           max_tile_n=65536, block_bytes_target=4 << 20):
    """ToroidalSplat.forward for a batch of points.

    points: (N, D) or (D,).  Returns (N,) attention weights (or a scalar for a
    single point), matching the PyTorch module.
    """
    single = points.ndim == 1
    pts = points[None, :] if single else points
    if (not jnp.issubdtype(pts.dtype, jnp.floating)) or pts.dtype == jnp.float64:
        pts = pts.astype(jnp.float32)
    n, d = pts.shape

    # Tiny batches / single points: launch overhead dominates -> pure JAX.
    if n < max(int(min_kernel_points), 128):
        out = _forward_reference(pts.astype(jnp.float32), params)
        return out[0] if single else out

    # ---- derived scalars, computed once outside the kernel ----
    f32 = jnp.float32
    abs_major = jnp.abs(params["major_radius"]).astype(f32)
    abs_minor = jnp.abs(params["minor_radius"]).astype(f32)
    inv_denom = 1.0 / (2.0 * abs_minor * abs_minor + 1e-8)
    sig_amp = jax.nn.sigmoid(params["amplitude"]).astype(f32)
    torus_coef = sig_amp * jax.nn.sigmoid(params["torus_weight"]).astype(f32)
    worm_coef = (sig_amp
                 * jax.nn.sigmoid(params["wormhole_weight"]).astype(f32)
                 * jax.nn.sigmoid(params["wormhole_strength"]).astype(f32))
    center = params["center"].astype(f32)
    ec = params["wormhole_exit"].astype(f32) - center
    half_ec_sq = 0.5 * jnp.sum(ec * ec)
    scalars = jnp.stack([abs_major, abs_minor, inv_denom,
                         torus_coef, worm_coef, half_ec_sq]).astype(f32)   # (6,)

    tile_n = _choose_tile_n(n, d * pts.dtype.itemsize, max_tile_n,
                            block_bytes_target)
    grid = (pl.cdiv(n, tile_n),)

    kernel = functools.partial(_toroidal_splat_kernel, d)
    out = pl.pallas_call(
        kernel,
        out_shape=jax.ShapeDtypeStruct((1, n), jnp.float32),
        grid=grid,
        in_specs=[
            pl.BlockSpec(memory_space=pltpu.MemorySpace.SMEM),   # scalars (6,)
            pl.BlockSpec((d, 1), lambda i: (0, 0)),              # center       (D,1)
            pl.BlockSpec((d, 1), lambda i: (0, 0)),              # exit - center (D,1)
            pl.BlockSpec((tile_n, d), lambda i: (i, 0)),         # points (N, D), native layout
        ],
        out_specs=pl.BlockSpec((1, tile_n), lambda i: (0, i)),   # lane-dense output
        compiler_params=pltpu.CompilerParams(
            dimension_semantics=("parallel",),
            vmem_limit_bytes=32 * 1024 * 1024),
    )(scalars, center.reshape(d, 1), ec.reshape(d, 1), pts)

    out = out[0]
    return out[0] if single else out


# --------------------------------- test ---------------------------------------
if __name__ == "__main__":
    def make_params(key, d, scale):
        k_c, k_e = jax.random.split(key)
        return {
            "center": scale * jax.random.normal(k_c, (d,), jnp.float32),
            "major_radius": jnp.float32(1.0),
            "minor_radius": jnp.float32(0.5),
            "wormhole_exit": scale * jax.random.normal(k_e, (d,), jnp.float32),
            "wormhole_strength": jnp.float32(0.5),
            "amplitude": jnp.float32(1.0),
            "torus_weight": jnp.float32(0.7),
            "wormhole_weight": jnp.float32(0.3),
        }

    key = jax.random.PRNGKey(0)
    k_p1, k_prm1, k_p2, k_prm2 = jax.random.split(key, 4)

    fwd = jax.jit(toroidal_splat_forward)

    # --- kernel path: D > 2 branch, ragged N (not a multiple of the tile) ---
    D1, N1 = 8, 3000
    params1 = make_params(k_prm1, D1, 0.3)
    pts1 = 0.8 * jax.random.normal(k_p1, (N1, D1), jnp.float32)
    out1 = jax.block_until_ready(fwd(pts1, params1))
    ref1 = _forward_reference(pts1, params1)
    assert out1.shape == (N1,)
    assert bool(jnp.all(jnp.isfinite(out1)))
    assert jnp.allclose(out1, ref1, atol=1e-6, rtol=1e-4), \
        float(jnp.max(jnp.abs(out1 - ref1)))

    # --- kernel path at a more realistic embedding dim ---
    D2, N2 = 64, 2000
    params2 = make_params(k_prm2, D2, 0.1)
    pts2 = 0.15 * jax.random.normal(k_p2, (N2, D2), jnp.float32)
    out2 = jax.block_until_ready(fwd(pts2, params2))
    ref2 = _forward_reference(pts2, params2)
    assert out2.shape == (N2,)
    assert jnp.allclose(out2, ref2, atol=1e-6, rtol=1e-4), \
        float(jnp.max(jnp.abs(out2 - ref2)))

    # --- tiny-batch / single-point fallback path (no kernel launch) ---
    out_small = jax.block_until_ready(toroidal_splat_forward(pts1[:5], params1))
    assert jnp.allclose(out_small, ref1[:5], atol=1e-6, rtol=1e-5)
    out_one = jax.block_until_ready(toroidal_splat_forward(pts1[0], params1))
    assert out_one.shape == ()
    assert jnp.allclose(out_one, ref1[0], atol=1e-6, rtol=1e-5)

    print("KERNEL_OK")
</pallas_src>

<mosaic_0001>
module attributes {stable_mosaic.version = 11 : i64} {
  func.func @_toroidal_splat_kernel(%arg0: i32, %arg1: memref<6xf32, #tpu.memory_space<smem>>, %arg2: memref<8x1xf32, #tpu.memory_space<vmem>>, %arg3: memref<8x1xf32, #tpu.memory_space<vmem>>, %arg4: memref<2944x8xf32, #tpu.memory_space<vmem>>, %arg5: memref<1x2944xf32, #tpu.memory_space<vmem>>) attributes {dimension_semantics = [#tpu.dimension_semantics<parallel>], iteration_bounds = array<i64: 2>, scalar_prefetch = 0 : i64, scratch_operands = 0 : i64, tpu.core_type = #tpu.core_type<tc>, window_params = [{transform_indices = @transform_0, window_bounds = array<i64: 6>}, {pipeline_mode = #tpu.pipeline_mode<synchronous>, transform_indices = @transform_1, window_bounds = array<i64: 8, 1>}, {pipeline_mode = #tpu.pipeline_mode<synchronous>, transform_indices = @transform_2, window_bounds = array<i64: 8, 1>}, {transform_indices = @transform_3, window_bounds = array<i64: 2944, 8>}, {transform_indices = @transform_4, window_bounds = array<i64: 1, 2944>}]} {
    %c0 = arith.constant 0 : index
    %c0_0 = arith.constant 0 : index
    %0 = vector.load %arg4[%c0, %c0_0] : memref<2944x8xf32, #tpu.memory_space<vmem>>, vector<2944x8xf32>
    %1 = tpu.transpose %0, [1, 0] : vector<2944x8xf32> -> vector<8x2944xf32>
    %c0_1 = arith.constant 0 : index
    %c0_2 = arith.constant 0 : index
    %2 = vector.load %arg2[%c0_1, %c0_2] : memref<8x1xf32, #tpu.memory_space<vmem>>, vector<8x1xf32>
    %c0_3 = arith.constant 0 : index
    %c0_4 = arith.constant 0 : index
    %3 = vector.load %arg3[%c0_3, %c0_4] : memref<8x1xf32, #tpu.memory_space<vmem>>, vector<8x1xf32>
    %c0_5 = arith.constant 0 : index
    %4 = memref.load %arg1[%c0_5] : memref<6xf32, #tpu.memory_space<smem>>
    %c1 = arith.constant 1 : index
    %5 = memref.load %arg1[%c1] : memref<6xf32, #tpu.memory_space<smem>>
    %c2 = arith.constant 2 : index
    %6 = memref.load %arg1[%c2] : memref<6xf32, #tpu.memory_space<smem>>
    %c3 = arith.constant 3 : index
    %7 = memref.load %arg1[%c3] : memref<6xf32, #tpu.memory_space<smem>>
    %c4 = arith.constant 4 : index
    %8 = memref.load %arg1[%c4] : memref<6xf32, #tpu.memory_space<smem>>
    %c5 = arith.constant 5 : index
    %9 = memref.load %arg1[%c5] : memref<6xf32, #tpu.memory_space<smem>>
    %10 = vector.broadcast %2 : vector<8x1xf32> to vector<8x2944xf32>
    %11 = arith.subf %1, %10 : vector<8x2944xf32>
    %12 = arith.mulf %11, %11 : vector<8x2944xf32>
    %13 = vector.extract_strided_slice %12 {offsets = [0, 0], sizes = [1, 2944], strides = [1, 1]} : vector<8x2944xf32> to vector<1x2944xf32>
    %14 = vector.extract_strided_slice %12 {offsets = [1, 0], sizes = [1, 2944], strides = [1, 1]} : vector<8x2944xf32> to vector<1x2944xf32>
    %15 = arith.addf %13, %14 : vector<1x2944xf32>
    %16 = vector.extract_strided_slice %12 {offsets = [2, 0], sizes = [6, 2944], strides = [1, 1]} : vector<8x2944xf32> to vector<6x2944xf32>
    %cst = arith.constant dense<0.000000e+00> : vector<2944xf32>
    %17 = vector.multi_reduction <add>, %16, %cst [0] : vector<6x2944xf32> to vector<2944xf32>
    %18 = vector.shape_cast %17 : vector<2944xf32> to vector<1x2944xf32>
    %19 = arith.addf %15, %18 : vector<1x2944xf32>
    %cst_6 = arith.constant 9.99999993E-9 : f32
    %20 = vector.broadcast %cst_6 : f32 to vector<1x2944xf32>
    %21 = arith.addf %15, %20 : vector<1x2944xf32>
    %22 = math.sqrt %21 : vector<1x2944xf32>
    %23 = vector.broadcast %4 : f32 to vector<1x2944xf32>
    %24 = arith.subf %22, %23 : vector<1x2944xf32>
    %25 = arith.mulf %24, %24 : vector<1x2944xf32>
    %26 = arith.addf %25, %18 : vector<1x2944xf32>
    %cst_7 = arith.constant 9.99999993E-9 : f32
    %27 = vector.broadcast %cst_7 : f32 to vector<1x2944xf32>
    %28 = arith.addf %26, %27 : vector<1x2944xf32>
    %29 = math.sqrt %28 : vector<1x2944xf32>
    %30 = vector.broadcast %5 : f32 to vector<1x2944xf32>
    %31 = arith.subf %29, %30 : vector<1x2944xf32>
    %32 = arith.mulf %31, %31 : vector<1x2944xf32>
    %cst_8 = arith.constant 0.000000e+00 : f32
    %33 = vector.broadcast %cst_8 : f32 to vector<1x2944xf32>
    %34 = arith.subf %33, %32 : vector<1x2944xf32>
    %35 = vector.broadcast %6 : f32 to vector<1x2944xf32>
    %36 = arith.mulf %34, %35 : vector<1x2944xf32>
    %37 = math.exp %36 : vector<1x2944xf32>
    %38 = vector.broadcast %3 : vector<8x1xf32> to vector<8x2944xf32>
    %39 = arith.mulf %11, %38 : vector<8x2944xf32>
    %cst_9 = arith.constant dense<0.000000e+00> : vector<2944xf32>
    %40 = vector.multi_reduction <add>, %39, %cst_9 [0] : vector<8x2944xf32> to vector<2944xf32>
    %41 = vector.shape_cast %40 : vector<2944xf32> to vector<1x2944xf32>
    %42 = arith.subf %41, %19 : vector<1x2944xf32>
    %43 = vector.broadcast %9 : f32 to vector<1x2944xf32>
    %44 = arith.subf %42, %43 : vector<1x2944xf32>
    %45 = math.exp %44 : vector<1x2944xf32>
    %46 = vector.broadcast %7 : f32 to vector<1x2944xf32>
    %47 = arith.mulf %46, %37 : vector<1x2944xf32>
    %48 = vector.broadcast %8 : f32 to vector<1x2944xf32>
    %49 = arith.mulf %48, %45 : vector<1x2944xf32>
    %50 = arith.addf %47, %49 : vector<1x2944xf32>
    %c0_10 = arith.constant 0 : index
    %c0_11 = arith.constant 0 : index
    %51 = vector.load %arg5[%c0_10, %c0_11] : memref<1x2944xf32, #tpu.memory_space<vmem>>, vector<1x2944xf32>
    tpu.vector_store %arg5[%c0_10, %c0_11], %50 {strides = array<i32>} : memref<1x2944xf32, #tpu.memory_space<vmem>>, vector<1x2944xf32>,
    return
  }
  func.func @transform_0(%arg0: i32) -> i32 {
    %c0_i32 = arith.constant 0 : i32
    %c0_i32_0 = arith.constant 0 : i32
    return %c0_i32 : i32
  }
  func.func @transform_1(%arg0: i32) -> (i32, i32) {
    %c0_i32 = arith.constant 0 : i32
    %c0_i32_0 = arith.constant 0 : i32
    %c0_i32_1 = arith.constant 0 : i32
    return %c0_i32, %c0_i32_0 : i32, i32
  }
  func.func @transform_2(%arg0: i32) -> (i32, i32) {
    %c0_i32 = arith.constant 0 : i32
    %c0_i32_0 = arith.constant 0 : i32
    %c0_i32_1 = arith.constant 0 : i32
    return %c0_i32, %c0_i32_0 : i32, i32
  }
  func.func @transform_3(%arg0: i32) -> (i32, i32) {
    %c0_i32 = arith.constant 0 : i32
    %c0_i32_0 = arith.constant 0 : i32
    return %arg0, %c0_i32 : i32, i32
  }
  func.func @transform_4(%arg0: i32) -> (i32, i32) {
    %c0_i32 = arith.constant 0 : i32
    %c0_i32_0 = arith.constant 0 : i32
    return %c0_i32, %arg0 : i32, i32
  }
}

</mosaic_0001>

<llo_original>
// kernel: toroidal_splat_forward.1
$region0: #{toroidal_splat_forward.1}
  #allocation0 [shape = 'u32[]', space=smem, size = 0x4, offset = 0x4, fixed_abs, tag = 'smem constant byte address 0x4 - core index']
  #allocation1 [shape = 'u32[144,128]{1,0:T(1,128)}', space=vmem, size = 0x12000, scoped, tag = 'internal scratch']
  %s0 = inlined_call_operand.vmem [shape: f32[6], index: 0, kind: input, shape index: {}]
  %s1 = inlined_call_operand.vmem [shape: f32[8,1], index: 1, kind: input, shape index: {}]
  %s2 = inlined_call_operand.vmem [shape: f32[8,1], index: 2, kind: input, shape index: {}]
  %s3 = inlined_call_operand.vmem [shape: f32[3000,8], index: 3, kind: input, shape index: {}]
  %s4 = inlined_call_operand.hbm [shape: f32[1,3000], index: 4, kind: output, shape index: {}]
  %s5 = sld [smem:[#allocation0]]
  $region53: #{toroidal_splat_forward.1} parent=0
    _
  %s7 = ssub.s32 1, %s5
  %s8 = scalar_select 0, %s7, %s5
  $region1: #{toroidal_splat_forward.1} parent=0
    #allocation2 [shape = 'u8[512]{0}', space=smem, size = 0x200, scoped, tag = 'input window, operand 0, single buffered']
    #allocation3 [shape = 's32[2]{0}', space=sflag, size = 0x8, scoped, tag = 'scoped memory for toroidal_splat_forward.1']
    #allocation4 [shape = 's32[2]{0}', space=sflag, size = 0x8, scoped, tag = 'scoped memory for toroidal_splat_forward.1']
    #allocation5 [shape = 'u8[23552]{0}', space=vmem, size = 0x5c00, scoped, tag = 'output window, operand 0']
    %9 = vsyncpa [#allocation4], 0
    %10 = vsyncpa [#allocation3], 0
    %s11 = scalar_lea.sflag [#allocation3], 1
    %12 = vsyncpa %s11, 0
    loop: start=0, step=1, limit=4
    $region2: #{toroidal_splat_forward.1} parent=1 // loop_pre_header
      _
    $region3: #{toroidal_splat_forward.1} parent=1 // loop_header
      %s14 = sphi 0, %s18
      %p15 = scmp.ge.s32.totalorder %s14, 4
      %s22 = sphi 0, %s22
      %s24 = sphi 0, %s22
      %s25 = sphi 0, %s24
      %s39 = sphi 0, %s25
      %s43 = sphi 0, %s43
      %s45 = sphi 0, %s43
      %s46 = sphi 0, %s45
      %s60 = sphi 0, %s46
      %s64 = sphi 0, %s64
      %s66 = sphi 0, %s64
      %s67 = sphi 0, %s66
      %s81 = sphi 0, %s67
      %s87 = sphi 0, %s89
      %s90 = sphi 0, %s87
      %s91 = sphi 0, %s90
      %s107 = sphi 0, %s91
      %s113 = sphi 0, %s115
      %s116 = sphi 0, %s113
      %s117 = sphi 0, %s116
      %s133 = sphi 0, %s117
    $region4: #{toroidal_splat_forward.1} parent=1 // loop_header_branch
      %17 = sbr.rel (%p15) target = $region8
    $region5: #{toroidal_splat_forward.1} parent=1 // loop_body
      %s19 = ssub.s32 %s14, 1
      %s20 = ssub.s32 %s14, 2
      %s21 = sadd.s32 %s14, 1
      %s23 = sadd.s32 %s22, 1
      %p26 = scmp.eq.s32.totalorder %s14, 1
      %p27 = scmp.ne.s32.totalorder %s22, %s24
      %p28 = scmp.eq.s32.totalorder %s14, 0
      %p29 = por %p27, %p28
      %p30 = scmp.ne.s32.totalorder %s22, %s24
      %p31 = scmp.eq.s32.totalorder %s19, 1
      %p32 = por %p30, %p31
      %p33 = scmp.ne.s32.totalorder %s24, %s25
      %p34 = scmp.eq.s32.totalorder %s19, 0
      %p35 = por %p33, %p34
      %p36 = scmp.ne.s32.totalorder %s24, %s25
      %p37 = scmp.eq.s32.totalorder %s20, 1
      %p38 = por %p36, %p37
      %p40 = scmp.ne.s32.totalorder %s25, %s39
      %p41 = scmp.eq.s32.totalorder %s20, 0
      %p42 = por %p40, %p41
      %s44 = sadd.s32 %s43, 1
      %p47 = scmp.eq.s32.totalorder %s14, 1
      %p48 = scmp.ne.s32.totalorder %s43, %s45
      %p49 = scmp.eq.s32.totalorder %s14, 0
      %p50 = por %p48, %p49
      %p51 = scmp.ne.s32.totalorder %s43, %s45
      %p52 = scmp.eq.s32.totalorder %s19, 1
      %p53 = por %p51, %p52
      %p54 = scmp.ne.s32.totalorder %s45, %s46
      %p55 = scmp.eq.s32.totalorder %s19, 0
      %p56 = por %p54, %p55
      %p57 = scmp.ne.s32.totalorder %s45, %s46
      %p58 = scmp.eq.s32.totalorder %s20, 1
      %p59 = por %p57, %p58
      %p61 = scmp.ne.s32.totalorder %s46, %s60
      %p62 = scmp.eq.s32.totalorder %s20, 0
      %p63 = por %p61, %p62
      %s65 = sadd.s32 %s64, 1
      %p68 = scmp.eq.s32.totalorder %s14, 1
      %p69 = scmp.ne.s32.totalorder %s64, %s66
      %p70 = scmp.eq.s32.totalorder %s14, 0
      %p71 = por %p69, %p70
      %p72 = scmp.ne.s32.totalorder %s64, %s66
      %p73 = scmp.eq.s32.totalorder %s19, 1
      %p74 = por %p72, %p73
      %p75 = scmp.ne.s32.totalorder %s66, %s67
      %p76 = scmp.eq.s32.totalorder %s19, 0
      %p77 = por %p75, %p76
      %p78 = scmp.ne.s32.totalorder %s66, %s67
      %p79 = scmp.eq.s32.totalorder %s20, 1
      %p80 = por %p78, %p79
      %p82 = scmp.ne.s32.totalorder %s67, %s81
      %p83 = scmp.eq.s32.totalorder %s20, 0
      %p84 = por %p82, %p83
      %s85 = ssub.s32 %s14, %s21
      %p86 = scmp.eq.s32.totalorder %s85, 0
      %s88 = sadd.s32 %s87, 1
      %s89 = scalar_select %p86, %s87, %s88
      %p92 = pneg %p86
      %p93 = scmp.eq.s32.totalorder %s14, 1
      %p94 = por %p92, %p93
      %p95 = scmp.ne.s32.totalorder %s87, %s90
      %p96 = scmp.eq.s32.totalorder %s14, 0
      %p97 = por %p95, %p96
      %p98 = scmp.ne.s32.totalorder %s87, %s90
      %p99 = scmp.eq.s32.totalorder %s19, 1
      %p100 = por %p98, %p99
      %p101 = scmp.ne.s32.totalorder %s90, %s91
      %p102 = scmp.eq.s32.totalorder %s19, 0
      %p103 = por %p101, %p102
      %p104 = scmp.ne.s32.totalorder %s90, %s91
      %p105 = scmp.eq.s32.totalorder %s20, 1
      %p106 = por %p104, %p105
      %p108 = scmp.ne.s32.totalorder %s91, %s107
      %p109 = scmp.eq.s32.totalorder %s20, 0
      %p110 = por %p108, %p109
      %s111 = ssub.s32 %s14, %s21
      %p112 = scmp.eq.s32.totalorder %s111, 0
      %s114 = sadd.s32 %s113, 1
      %s115 = scalar_select %p112, %s113, %s114
      %p118 = pneg %p112
      %p119 = scmp.eq.s32.totalorder %s14, 1
      %p120 = por %p118, %p119
      %p121 = scmp.ne.s32.totalorder %s113, %s116
      %p122 = scmp.eq.s32.totalorder %s14, 0
      %p123 = por %p121, %p122
      %p124 = scmp.ne.s32.totalorder %s113, %s116
      %p125 = scmp.eq.s32.totalorder %s19, 1
      %p126 = por %p124, %p125
      %p127 = scmp.ne.s32.totalorder %s116, %s117
      %p128 = scmp.eq.s32.totalorder %s19, 0
      %p129 = por %p127, %p128
      %p130 = scmp.ne.s32.totalorder %s116, %s117
      %p131 = scmp.eq.s32.totalorder %s20, 1
      %p132 = por %p130, %p131
      %p134 = scmp.ne.s32.totalorder %s117, %s133
      %p135 = scmp.eq.s32.totalorder %s20, 0
      %p136 = por %p134, %p135
      %p137 = scmp.le.s32.totalorder 1, %s14
      %p138 = scmp.lt.s32.totalorder %s14, 3
      %p139 = pnand %p137, %p138
      %p140 = pneg %p139
      // Predicated region
      $region9: #{toroidal_splat_forward.1} parent=5 // pred_check
        _
      $region10: #{toroidal_splat_forward.1} parent=5 // pred_check_branch
        %142 = sbr.rel (%p139) target = $region12
      $region11: #{toroidal_splat_forward.1} parent=5 // pred_region
        %s143 = ssub.s32 %s14, 1
        // Predicated region
        $region13: #{toroidal_splat_forward.1} parent=11 // pred_check
          %p144 = pneg %p35
        $region14: #{toroidal_splat_forward.1} parent=11 // pred_check_branch
          %146 = sbr.rel (%p144) target = $region16
        $region15: #{toroidal_splat_forward.1} parent=11 // pred_region
          %s148 = ssub.s32 16, 16
          %149 = vsyncadd [#allocation4], %s148
          %s151 = sshll.u32 %s0, 4
          %s152 = int_to_ptr.vmem [resolvable:$true] %s151
          %154 = dma.vmem_to_smem %s152, 16, [#allocation2], [#allocation4]
        $region16: #{toroidal_splat_forward.1} parent=11 // pred_fallthru
          _
        // Predicated region
        $region17: #{toroidal_splat_forward.1} parent=11 // pred_check
          %p155 = pneg %p56
        $region18: #{toroidal_splat_forward.1} parent=11 // pred_check_branch
          %157 = sbr.rel (%p155) target = $region20
        $region19: #{toroidal_splat_forward.1} parent=11 // pred_region
          _
        $region20: #{toroidal_splat_forward.1} parent=11 // pred_fallthru
          _
        // Predicated region
        $region21: #{toroidal_splat_forward.1} parent=11 // pred_check
          %p158 = pneg %p77
        $region22: #{toroidal_splat_forward.1} parent=11 // pred_check_branch
          %160 = sbr.rel (%p158) target = $region24
        $region23: #{toroidal_splat_forward.1} parent=11 // pred_region
          _
        $region24: #{toroidal_splat_forward.1} parent=11 // pred_fallthru
          _
      $region12: #{toroidal_splat_forward.1} parent=5 // pred_fallthru
        _
      %p161 = scmp.lt.s32.totalorder %s14, 2
      // Predicated region
      $region25: #{toroidal_splat_forward.1} parent=5 // pred_check
        %p162 = pneg %p161
      $region26: #{toroidal_splat_forward.1} parent=5 // pred_check_branch
        %164 = sbr.rel (%p162) target = $region28
      $region27: #{toroidal_splat_forward.1} parent=5 // pred_region
        // Predicated region
        $region29: #{toroidal_splat_forward.1} parent=27 // pred_check
          %p165 = pneg %p97
        $region30: #{toroidal_splat_forward.1} parent=27 // pred_check_branch
          %167 = sbr.rel (%p165) target = $region32
        $region31: #{toroidal_splat_forward.1} parent=27 // pred_region
          %s168 = smul.u32 368, %s14
          %s169 = ssub.s32 375, %s168
          %p170 = scmp.lt.s32.totalorder %s169, 368
          %s171 = scalar_select %p170, %s169, 368
          %s172 = smul.u32 128, %s171
          %p173 = scmp.lt.s32.totalorder %s168, 374
          %s174 = scalar_select %p173, %s168, 374
          %s175 = smul.addr %s174, 8
          %s176 = scalar_lea.vmem %s3, %s175
          %s177 = smul.u32 368, %s14
          %s178 = ssub.s32 375, %s177
          %p179 = scmp.lt.s32.totalorder %s178, 368
          %s180 = scalar_select %p179, %s178, 368
          %s181 = smul.u32 128, %s180
        $region32: #{toroidal_splat_forward.1} parent=27 // pred_fallthru
          _
      $region28: #{toroidal_splat_forward.1} parent=5 // pred_fallthru
        _
      %p182 = scmp.le.s32.totalorder 1, %s14
      %p183 = scmp.lt.s32.totalorder %s14, 3
      %p184 = pnand %p182, %p183
      %p185 = pneg %p184
      // Predicated region
      $region33: #{toroidal_splat_forward.1} parent=5 // pred_check
        _
      $region34: #{toroidal_splat_forward.1} parent=5 // pred_check_branch
        %187 = sbr.rel (%p184) target = $region36
      $region35: #{toroidal_splat_forward.1} parent=5 // pred_region
        %s188 = ssub.s32 %s14, 1
        // Predicated region
        $region37: #{toroidal_splat_forward.1} parent=35 // pred_check
          %p189 = pneg %p35
        $region38: #{toroidal_splat_forward.1} parent=35 // pred_check_branch
          %191 = sbr.rel (%p189) target = $region40
        $region39: #{toroidal_splat_forward.1} parent=35 // pred_region
          %192 = dma.done [#allocation4], 16
        $region40: #{toroidal_splat_forward.1} parent=35 // pred_fallthru
          _
        %193 = sfence
        %p194 = pneg %p35
        %p195 = pneg %p32
        %p196 = pneg %p56
        %p197 = pneg %p53
        %p198 = pneg %p77
        %p199 = pneg %p74
        %s200 = smul.u32 368, %s19
        %s201 = ssub.s32 375, %s200
        %p202 = scmp.lt.s32.totalorder %s201, 368
        %s203 = scalar_select %p202, %s201, 368
        %s204 = smul.u32 128, %s203
        %p205 = scmp.lt.s32.totalorder %s200, 374
        %s206 = scalar_select %p205, %s200, 374
        %s207 = smul.addr %s206, 8
        %s208 = scalar_lea.vmem %s3, %s207
        %p209 = pneg %p103
        %p210 = pneg %p100
        %p211 = pneg %p129
        %p212 = pneg %p126
        %s213 = sand.u32 %s116, 1
        %s214 = scalar_lea.sflag [#allocation3], %s213
        %s215 = sand.u32 %s116, 1
        %s216 = smul.addr %s215, 23
        %s217 = scalar_lea.vmem [#allocation5], %s216
        %s218 = smul.u32 368, %s19
        %s219 = ssub.s32 375, %s218
        %p220 = scmp.lt.s32.totalorder %s219, 368
        %s221 = scalar_select %p220, %s219, 368
        %s222 = smul.u32 128, %s221
        %p223 = scmp.lt.s32.totalorder %s218, 374
        %s224 = scalar_select %p223, %s218, 374
        %s225 = smul.addr %s224, 8
        %s226 = scalar_lea.vmem %s3, %s225
        %s227 = smul.u32 368, %s19
        %s228 = ssub.s32 375, %s227
        %p229 = scmp.lt.s32.totalorder %s228, 368
        %s230 = scalar_select %p229, %s228, 368
        %s231 = smul.u32 128, %s230
        %s232 = smul.u32 23, %s19
        %s233 = ssub.s32 24, %s232
        %p234 = scmp.lt.s32.totalorder %s233, 23
        %s235 = scalar_select %p234, %s233, 23
        %s236 = smul.u32 16, %s235
        %v237 = vld [vmem:[%s226] sm:$0xff]
        %v238 = vld [vmem:[%s226 + $0x8] sm:$0xff]
        %v239 = vld [vmem:[%s226 + $0x10] sm:$0xff]
        %v240 = vld [vmem:[%s226 + $0x18] sm:$0xff]
        %v241 = vld [vmem:[%s226 + $0x20] sm:$0xff]
        %v242 = vld [vmem:[%s226 + $0x28] sm:$0xff]
        %v243 = vld [vmem:[%s226 + $0x30] sm:$0xff]
        %v244 = vld [vmem:[%s226 + $0x38] sm:$0xff]
        %v245 = vld [vmem:[%s226 + $0x40] sm:$0xff]
        %v246 = vld [vmem:[%s226 + $0x48] sm:$0xff]
        %v247 = vld [vmem:[%s226 + $0x50] sm:$0xff]
        %v248 = vld [vmem:[%s226 + $0x58] sm:$0xff]
        %v249 = vld [vmem:[%s226 + $0x60] sm:$0xff]
        %v250 = vld [vmem:[%s226 + $0x68] sm:$0xff]
        %v251 = vld [vmem:[%s226 + $0x70] sm:$0xff]
        %v252 = vld [vmem:[%s226 + $0x78] sm:$0xff]
        %v253 = vld [vmem:[%s226 + $0x80] sm:$0xff]
        %v254 = vld [vmem:[%s226 + $0x88] sm:$0xff]
        %v255 = vld [vmem:[%s226 + $0x90] sm:$0xff]
        %v256 = vld [vmem:[%s226 + $0x98] sm:$0xff]
        %v257 = vld [vmem:[%s226 + $0xa0] sm:$0xff]
        %v258 = vld [vmem:[%s226 + $0xa8] sm:$0xff]
        %v259 = vld [vmem:[%s226 + $0xb0] sm:$0xff]
        %v260 = vld [vmem:[%s226 + $0xb8] sm:$0xff]
        %v261 = vld [vmem:[%s226 + $0xc0] sm:$0xff]
        %v262 = vld [vmem:[%s226 + $0xc8] sm:$0xff]
        %v263 = vld [vmem:[%s226 + $0xd0] sm:$0xff]
        %v264 = vld [vmem:[%s226 + $0xd8] sm:$0xff]
        %v265 = vld [vmem:[%s226 + $0xe0] sm:$0xff]
        %v266 = vld [vmem:[%s226 + $0xe8] sm:$0xff]
        %v267 = vld [vmem:[%s226 + $0xf0] sm:$0xff]
        %v268 = vld [vmem:[%s226 + $0xf8] sm:$0xff]
        %v269 = vld [vmem:[%s226 + $0x100] sm:$0xff]
        %v270 = vld [vmem:[%s226 + $0x108] sm:$0xff]
        %v271 = vld [vmem:[%s226 + $0x110] sm:$0xff]
        %v272 = vld [vmem:[%s226 + $0x118] sm:$0xff]
        %v273 = vld [vmem:[%s226 + $0x120] sm:$0xff]
        %v274 = vld [vmem:[%s226 + $0x128] sm:$0xff]
        %v275 = vld [vmem:[%s226 + $0x130] sm:$0xff]
        %v276 = vld [vmem:[%s226 + $0x138] sm:$0xff]
        %v277 = vld [vmem:[%s226 + $0x140] sm:$0xff]
        %v278 = vld [vmem:[%s226 + $0x148] sm:$0xff]
        %v279 = vld [vmem:[%s226 + $0x150] sm:$0xff]
        %v280 = vld [vmem:[%s226 + $0x158] sm:$0xff]
        %v281 = vld [vmem:[%s226 + $0x160] sm:$0xff]
        %v282 = vld [vmem:[%s226 + $0x168] sm:$0xff]
        %v283 = vld [vmem:[%s226 + $0x170] sm:$0xff]
        %v284 = vld [vmem:[%s226 + $0x178] sm:$0xff]
        %v285 = vld [vmem:[%s226 + $0x180] sm:$0xff]
        %v286 = vld [vmem:[%s226 + $0x188] sm:$0xff]
        %v287 = vld [vmem:[%s226 + $0x190] sm:$0xff]
        %v288 = vld [vmem:[%s226 + $0x198] sm:$0xff]
        %v289 = vld [vmem:[%s226 + $0x1a0] sm:$0xff]
        %v290 = vld [vmem:[%s226 + $0x1a8] sm:$0xff]
        %v291 = vld [vmem:[%s226 + $0x1b0] sm:$0xff]
        %v292 = vld [vmem:[%s226 + $0x1b8] sm:$0xff]
        %v293 = vld [vmem:[%s226 + $0x1c0] sm:$0xff]
        %v294 = vld [vmem:[%s226 + $0x1c8] sm:$0xff]
        %v295 = vld [vmem:[%s226 + $0x1d0] sm:$0xff]
        %v296 = vld [vmem:[%s226 + $0x1d8] sm:$0xff]
        %v297 = vld [vmem:[%s226 + $0x1e0] sm:$0xff]
        %v298 = vld [vmem:[%s226 + $0x1e8] sm:$0xff]
        %v299 = vld [vmem:[%s226 + $0x1f0] sm:$0xff]
        %v300 = vld [vmem:[%s226 + $0x1f8] sm:$0xff]
        %v301 = vld [vmem:[%s226 + $0x200] sm:$0xff]
        %v302 = vld [vmem:[%s226 + $0x208] sm:$0xff]
        %v303 = vld [vmem:[%s226 + $0x210] sm:$0xff]
        %v304 = vld [vmem:[%s226 + $0x218] sm:$0xff]
        %v305 = vld [vmem:[%s226 + $0x220] sm:$0xff]
        %v306 = vld [vmem:[%s226 + $0x228] sm:$0xff]
        %v307 = vld [vmem:[%s226 + $0x230] sm:$0xff]
        %v308 = vld [vmem:[%s226 + $0x238] sm:$0xff]
        %v309 = vld [vmem:[%s226 + $0x240] sm:$0xff]
        %v310 = vld [vmem:[%s226 + $0x248] sm:$0xff]
        %v311 = vld [vmem:[%s226 + $0x250] sm:$0xff]
        %v312 = vld [vmem:[%s226 + $0x258] sm:$0xff]
        %v313 = vld [vmem:[%s226 + $0x260] sm:$0xff]
        %v314 = vld [vmem:[%s226 + $0x268] sm:$0xff]
        %v315 = vld [vmem:[%s226 + $0x270] sm:$0xff]
        %v316 = vld [vmem:[%s226 + $0x278] sm:$0xff]
        %v317 = vld [vmem:[%s226 + $0x280] sm:$0xff]
        %v318 = vld [vmem:[%s226 + $0x288] sm:$0xff]
        %v319 = vld [vmem:[%s226 + $0x290] sm:$0xff]
        %v320 = vld [vmem:[%s226 + $0x298] sm:$0xff]
        %v321 = vld [vmem:[%s226 + $0x2a0] sm:$0xff]
        %v322 = vld [vmem:[%s226 + $0x2a8] sm:$0xff]
        %v323 = vld [vmem:[%s226 + $0x2b0] sm:$0xff]
        %v324 = vld [vmem:[%s226 + $0x2b8] sm:$0xff]
        %v325 = vld [vmem:[%s226 + $0x2c0] sm:$0xff]
        %v326 = vld [vmem:[%s226 + $0x2c8] sm:$0xff]
        %v327 = vld [vmem:[%s226 + $0x2d0] sm:$0xff]
        %v328 = vld [vmem:[%s226 + $0x2d8] sm:$0xff]
        %v329 = vld [vmem:[%s226 + $0x2e0] sm:$0xff]
        %v330 = vld [vmem:[%s226 + $0x2e8] sm:$0xff]
        %v331 = vld [vmem:[%s226 + $0x2f0] sm:$0xff]
        %v332 = vld [vmem:[%s226 + $0x2f8] sm:$0xff]
        %v333 = vld [vmem:[%s226 + $0x300] sm:$0xff]
        %v334 = vld [vmem:[%s226 + $0x308] sm:$0xff]
        %v335 = vld [vmem:[%s226 + $0x310] sm:$0xff]
        %v336 = vld [vmem:[%s226 + $0x318] sm:$0xff]
        %v337 = vld [vmem:[%s226 + $0x320] sm:$0xff]
        %v338 = vld [vmem:[%s226 + $0x328] sm:$0xff]
        %v339 = vld [vmem:[%s226 + $0x330] sm:$0xff]
        %v340 = vld [vmem:[%s226 + $0x338] sm:$0xff]
        %v341 = vld [vmem:[%s226 + $0x340] sm:$0xff]
        %v342 = vld [vmem:[%s226 + $0x348] sm:$0xff]
        %v343 = vld [vmem:[%s226 + $0x350] sm:$0xff]
        %v344 = vld [vmem:[%s226 + $0x358] sm:$0xff]
        %v345 = vld [vmem:[%s226 + $0x360] sm:$0xff]
        %v346 = vld [vmem:[%s226 + $0x368] sm:$0xff]
        %v347 = vld [vmem:[%s226 + $0x370] sm:$0xff]
        %v348 = vld [vmem:[%s226 + $0x378] sm:$0xff]
        %v349 = vld [vmem:[%s226 + $0x380] sm:$0xff]
        %v350 = vld [vmem:[%s226 + $0x388] sm:$0xff]
        %v351 = vld [vmem:[%s226 + $0x390] sm:$0xff]
        %v352 = vld [vmem:[%s226 + $0x398] sm:$0xff]
        %v353 = vld [vmem:[%s226 + $0x3a0] sm:$0xff]
        %v354 = vld [vmem:[%s226 + $0x3a8] sm:$0xff]
        %v355 = vld [vmem:[%s226 + $0x3b0] sm:$0xff]
        %v356 = vld [vmem:[%s226 + $0x3b8] sm:$0xff]
        %v357 = vld [vmem:[%s226 + $0x3c0] sm:$0xff]
        %v358 = vld [vmem:[%s226 + $0x3c8] sm:$0xff]
        %v359 = vld [vmem:[%s226 + $0x3d0] sm:$0xff]
        %v360 = vld [vmem:[%s226 + $0x3d8] sm:$0xff]
        %v361 = vld [vmem:[%s226 + $0x3e0] sm:$0xff]
        %v362 = vld [vmem:[%s226 + $0x3e8] sm:$0xff]
        %v363 = vld [vmem:[%s226 + $0x3f0] sm:$0xff]
        %v364 = vld [vmem:[%s226 + $0x3f8] sm:$0xff]
        %v365 = vld [vmem:[%s226 + $0x400] sm:$0xff]
        %v366 = vld [vmem:[%s226 + $0x408] sm:$0xff]
        %v367 = vld [vmem:[%s226 + $0x410] sm:$0xff]
        %v368 = vld [vmem:[%s226 + $0x418] sm:$0xff]
        %v369 = vld [vmem:[%s226 + $0x420] sm:$0xff]
        %v370 = vld [vmem:[%s226 + $0x428] sm:$0xff]
        %v371 = vld [vmem:[%s226 + $0x430] sm:$0xff]
        %v372 = vld [vmem:[%s226 + $0x438] sm:$0xff]
        %v373 = vld [vmem:[%s226 + $0x440] sm:$0xff]
        %v374 = vld [vmem:[%s226 + $0x448] sm:$0xff]
        %v375 = vld [vmem:[%s226 + $0x450] sm:$0xff]
        %v376 = vld [vmem:[%s226 + $0x458] sm:$0xff]
        %v377 = vld [vmem:[%s226 + $0x460] sm:$0xff]
        %v378 = vld [vmem:[%s226 + $0x468] sm:$0xff]
        %v379 = vld [vmem:[%s226 + $0x470] sm:$0xff]
        %v380 = vld [vmem:[%s226 + $0x478] sm:$0xff]
        %v381 = vld [vmem:[%s226 + $0x480] sm:$0xff]
        %v382 = vld [vmem:[%s226 + $0x488] sm:$0xff]
        %v383 = vld [vmem:[%s226 + $0x490] sm:$0xff]
        %v384 = vld [vmem:[%s226 + $0x498] sm:$0xff]
        %v385 = vld [vmem:[%s226 + $0x4a0] sm:$0xff]
        %v386 = vld [vmem:[%s226 + $0x4a8] sm:$0xff]
        %v387 = vld [vmem:[%s226 + $0x4b0] sm:$0xff]
        %v388 = vld [vmem:[%s226 + $0x4b8] sm:$0xff]
        %v389 = vld [vmem:[%s226 + $0x4c0] sm:$0xff]
        %v390 = vld [vmem:[%s226 + $0x4c8] sm:$0xff]
        %v391 = vld [vmem:[%s226 + $0x4d0] sm:$0xff]
        %v392 = vld [vmem:[%s226 + $0x4d8] sm:$0xff]
        %v393 = vld [vmem:[%s226 + $0x4e0] sm:$0xff]
        %v394 = vld [vmem:[%s226 + $0x4e8] sm:$0xff]
        %v395 = vld [vmem:[%s226 + $0x4f0] sm:$0xff]
        %v396 = vld [vmem:[%s226 + $0x4f8] sm:$0xff]
        %v397 = vld [vmem:[%s226 + $0x500] sm:$0xff]
        %v398 = vld [vmem:[%s226 + $0x508] sm:$0xff]
        %v399 = vld [vmem:[%s226 + $0x510] sm:$0xff]
        %v400 = vld [vmem:[%s226 + $0x518] sm:$0xff]
        %v401 = vld [vmem:[%s226 + $0x520] sm:$0xff]
        %v402 = vld [vmem:[%s226 + $0x528] sm:$0xff]
        %v403 = vld [vmem:[%s226 + $0x530] sm:$0xff]
        %v404 = vld [vmem:[%s226 + $0x538] sm:$0xff]
        %v405 = vld [vmem:[%s226 + $0x540] sm:$0xff]
        %v406 = vld [vmem:[%s226 + $0x548] sm:$0xff]
        %v407 = vld [vmem:[%s226 + $0x550] sm:$0xff]
        %v408 = vld [vmem:[%s226 + $0x558] sm:$0xff]
        %v409 = vld [vmem:[%s226 + $0x560] sm:$0xff]
        %v410 = vld [vmem:[%s226 + $0x568] sm:$0xff]
        %v411 = vld [vmem:[%s226 + $0x570] sm:$0xff]
        %v412 = vld [vmem:[%s226 + $0x578] sm:$0xff]
        %v413 = vld [vmem:[%s226 + $0x580] sm:$0xff]
        %v414 = vld [vmem:[%s226 + $0x588] sm:$0xff]
        %v415 = vld [vmem:[%s226 + $0x590] sm:$0xff]
        %v416 = vld [vmem:[%s226 + $0x598] sm:$0xff]
        %v417 = vld [vmem:[%s226 + $0x5a0] sm:$0xff]
        %v418 = vld [vmem:[%s226 + $0x5a8] sm:$0xff]
        %v419 = vld [vmem:[%s226 + $0x5b0] sm:$0xff]
        %v420 = vld [vmem:[%s226 + $0x5b8] sm:$0xff]
        %v421 = vld [vmem:[%s226 + $0x5c0] sm:$0xff]
        %v422 = vld [vmem:[%s226 + $0x5c8] sm:$0xff]
        %v423 = vld [vmem:[%s226 + $0x5d0] sm:$0xff]
        %v424 = vld [vmem:[%s226 + $0x5d8] sm:$0xff]
        %v425 = vld [vmem:[%s226 + $0x5e0] sm:$0xff]
        %v426 = vld [vmem:[%s226 + $0x5e8] sm:$0xff]
        %v427 = vld [vmem:[%s226 + $0x5f0] sm:$0xff]
        %v428 = vld [vmem:[%s226 + $0x5f8] sm:$0xff]
        %v429 = vld [vmem:[%s226 + $0x600] sm:$0xff]
        %v430 = vld [vmem:[%s226 + $0x608] sm:$0xff]
        %v431 = vld [vmem:[%s226 + $0x610] sm:$0xff]
        %v432 = vld [vmem:[%s226 + $0x618] sm:$0xff]
        %v433 = vld [vmem:[%s226 + $0x620] sm:$0xff]
        %v434 = vld [vmem:[%s226 + $0x628] sm:$0xff]
        %v435 = vld [vmem:[%s226 + $0x630] sm:$0xff]
        %v436 = vld [vmem:[%s226 + $0x638] sm:$0xff]
        %v437 = vld [vmem:[%s226 + $0x640] sm:$0xff]
        %v438 = vld [vmem:[%s226 + $0x648] sm:$0xff]
        %v439 = vld [vmem:[%s226 + $0x650] sm:$0xff]
        %v440 = vld [vmem:[%s226 + $0x658] sm:$0xff]
        %v441 = vld [vmem:[%s226 + $0x660] sm:$0xff]
        %v442 = vld [vmem:[%s226 + $0x668] sm:$0xff]
        %v443 = vld [vmem:[%s226 + $0x670] sm:$0xff]
        %v444 = vld [vmem:[%s226 + $0x678] sm:$0xff]
        %v445 = vld [vmem:[%s226 + $0x680] sm:$0xff]
        %v446 = vld [vmem:[%s226 + $0x688] sm:$0xff]
        %v447 = vld [vmem:[%s226 + $0x690] sm:$0xff]
        %v448 = vld [vmem:[%s226 + $0x698] sm:$0xff]
        %v449 = vld [vmem:[%s226 + $0x6a0] sm:$0xff]
        %v450 = vld [vmem:[%s226 + $0x6a8] sm:$0xff]
        %v451 = vld [vmem:[%s226 + $0x6b0] sm:$0xff]
        %v452 = vld [vmem:[%s226 + $0x6b8] sm:$0xff]
        %v453 = vld [vmem:[%s226 + $0x6c0] sm:$0xff]
        %v454 = vld [vmem:[%s226 + $0x6c8] sm:$0xff]
        %v455 = vld [vmem:[%s226 + $0x6d0] sm:$0xff]
        %v456 = vld [vmem:[%s226 + $0x6d8] sm:$0xff]
        %v457 = vld [vmem:[%s226 + $0x6e0] sm:$0xff]
        %v458 = vld [vmem:[%s226 + $0x6e8] sm:$0xff]
        %v459 = vld [vmem:[%s226 + $0x6f0] sm:$0xff]
        %v460 = vld [vmem:[%s226 + $0x6f8] sm:$0xff]
        %v461 = vld [vmem:[%s226 + $0x700] sm:$0xff]
        %v462 = vld [vmem:[%s226 + $0x708] sm:$0xff]
        %v463 = vld [vmem:[%s226 + $0x710] sm:$0xff]
        %v464 = vld [vmem:[%s226 + $0x718] sm:$0xff]
        %v465 = vld [vmem:[%s226 + $0x720] sm:$0xff]
        %v466 = vld [vmem:[%s226 + $0x728] sm:$0xff]
        %v467 = vld [vmem:[%s226 + $0x730] sm:$0xff]
        %v468 = vld [vmem:[%s226 + $0x738] sm:$0xff]
        %v469 = vld [vmem:[%s226 + $0x740] sm:$0xff]
        %v470 = vld [vmem:[%s226 + $0x748] sm:$0xff]
        %v471 = vld [vmem:[%s226 + $0x750] sm:$0xff]
        %v472 = vld [vmem:[%s226 + $0x758] sm:$0xff]
        %v473 = vld [vmem:[%s226 + $0x760] sm:$0xff]
        %v474 = vld [vmem:[%s226 + $0x768] sm:$0xff]
        %v475 = vld [vmem:[%s226 + $0x770] sm:$0xff]
        %v476 = vld [vmem:[%s226 + $0x778] sm:$0xff]
        %v477 = vld [vmem:[%s226 + $0x780] sm:$0xff]
        %v478 = vld [vmem:[%s226 + $0x788] sm:$0xff]
        %v479 = vld [vmem:[%s226 + $0x790] sm:$0xff]
        %v480 = vld [vmem:[%s226 + $0x798] sm:$0xff]
        %v481 = vld [vmem:[%s226 + $0x7a0] sm:$0xff]
        %v482 = vld [vmem:[%s226 + $0x7a8] sm:$0xff]
        %v483 = vld [vmem:[%s226 + $0x7b0] sm:$0xff]
        %v484 = vld [vmem:[%s226 + $0x7b8] sm:$0xff]
        %v485 = vld [vmem:[%s226 + $0x7c0] sm:$0xff]
        %v486 = vld [vmem:[%s226 + $0x7c8] sm:$0xff]
        %v487 = vld [vmem:[%s226 + $0x7d0] sm:$0xff]
        %v488 = vld [vmem:[%s226 + $0x7d8] sm:$0xff]
        %v489 = vld [vmem:[%s226 + $0x7e0] sm:$0xff]
        %v490 = vld [vmem:[%s226 + $0x7e8] sm:$0xff]
        %v491 = vld [vmem:[%s226 + $0x7f0] sm:$0xff]
        %v492 = vld [vmem:[%s226 + $0x7f8] sm:$0xff]
        %v493 = vld [vmem:[%s226 + $0x800] sm:$0xff]
        %v494 = vld [vmem:[%s226 + $0x808] sm:$0xff]
        %v495 = vld [vmem:[%s226 + $0x810] sm:$0xff]
        %v496 = vld [vmem:[%s226 + $0x818] sm:$0xff]
        %v497 = vld [vmem:[%s226 + $0x820] sm:$0xff]
        %v498 = vld [vmem:[%s226 + $0x828] sm:$0xff]
        %v499 = vld [vmem:[%s226 + $0x830] sm:$0xff]
        %v500 = vld [vmem:[%s226 + $0x838] sm:$0xff]
        %v501 = vld [vmem:[%s226 + $0x840] sm:$0xff]
        %v502 = vld [vmem:[%s226 + $0x848] sm:$0xff]
        %v503 = vld [vmem:[%s226 + $0x850] sm:$0xff]
        %v504 = vld [vmem:[%s226 + $0x858] sm:$0xff]
        %v505 = vld [vmem:[%s226 + $0x860] sm:$0xff]
        %v506 = vld [vmem:[%s226 + $0x868] sm:$0xff]
        %v507 = vld [vmem:[%s226 + $0x870] sm:$0xff]
        %v508 = vld [vmem:[%s226 + $0x878] sm:$0xff]
        %v509 = vld [vmem:[%s226 + $0x880] sm:$0xff]
        %v510 = vld [vmem:[%s226 + $0x888] sm:$0xff]
        %v511 = vld [vmem:[%s226 + $0x890] sm:$0xff]
        %v512 = vld [vmem:[%s226 + $0x898] sm:$0xff]
        %v513 = vld [vmem:[%s226 + $0x8a0] sm:$0xff]
        %v514 = vld [vmem:[%s226 + $0x8a8] sm:$0xff]
        %v515 = vld [vmem:[%s226 + $0x8b0] sm:$0xff]
        %v516 = vld [vmem:[%s226 + $0x8b8] sm:$0xff]
        %v517 = vld [vmem:[%s226 + $0x8c0] sm:$0xff]
        %v518 = vld [vmem:[%s226 + $0x8c8] sm:$0xff]
        %v519 = vld [vmem:[%s226 + $0x8d0] sm:$0xff]
        %v520 = vld [vmem:[%s226 + $0x8d8] sm:$0xff]
        %v521 = vld [vmem:[%s226 + $0x8e0] sm:$0xff]
        %v522 = vld [vmem:[%s226 + $0x8e8] sm:$0xff]
        %v523 = vld [vmem:[%s226 + $0x8f0] sm:$0xff]
        %v524 = vld [vmem:[%s226 + $0x8f8] sm:$0xff]
        %v525 = vld [vmem:[%s226 + $0x900] sm:$0xff]
        %v526 = vld [vmem:[%s226 + $0x908] sm:$0xff]
        %v527 = vld [vmem:[%s226 + $0x910] sm:$0xff]
        %v528 = vld [vmem:[%s226 + $0x918] sm:$0xff]
        %v529 = vld [vmem:[%s226 + $0x920] sm:$0xff]
        %v530 = vld [vmem:[%s226 + $0x928] sm:$0xff]
        %v531 = vld [vmem:[%s226 + $0x930] sm:$0xff]
        %v532 = vld [vmem:[%s226 + $0x938] sm:$0xff]
        %v533 = vld [vmem:[%s226 + $0x940] sm:$0xff]
        %v534 = vld [vmem:[%s226 + $0x948] sm:$0xff]
        %v535 = vld [vmem:[%s226 + $0x950] sm:$0xff]
        %v536 = vld [vmem:[%s226 + $0x958] sm:$0xff]
        %v537 = vld [vmem:[%s226 + $0x960] sm:$0xff]
        %v538 = vld [vmem:[%s226 + $0x968] sm:$0xff]
        %v539 = vld [vmem:[%s226 + $0x970] sm:$0xff]
        %v540 = vld [vmem:[%s226 + $0x978] sm:$0xff]
        %v541 = vld [vmem:[%s226 + $0x980] sm:$0xff]
        %v542 = vld [vmem:[%s226 + $0x988] sm:$0xff]
        %v543 = vld [vmem:[%s226 + $0x990] sm:$0xff]
        %v544 = vld [vmem:[%s226 + $0x998] sm:$0xff]
        %v545 = vld [vmem:[%s226 + $0x9a0] sm:$0xff]
        %v546 = vld [vmem:[%s226 + $0x9a8] sm:$0xff]
        %v547 = vld [vmem:[%s226 + $0x9b0] sm:$0xff]
        %v548 = vld [vmem:[%s226 + $0x9b8] sm:$0xff]
        %v549 = vld [vmem:[%s226 + $0x9c0] sm:$0xff]
        %v550 = vld [vmem:[%s226 + $0x9c8] sm:$0xff]
        %v551 = vld [vmem:[%s226 + $0x9d0] sm:$0xff]
        %v552 = vld [vmem:[%s226 + $0x9d8] sm:$0xff]
        %v553 = vld [vmem:[%s226 + $0x9e0] sm:$0xff]
        %v554 = vld [vmem:[%s226 + $0x9e8] sm:$0xff]
        %v555 = vld [vmem:[%s226 + $0x9f0] sm:$0xff]
        %v556 = vld [vmem:[%s226 + $0x9f8] sm:$0xff]
        %v557 = vld [vmem:[%s226 + $0xa00] sm:$0xff]
        %v558 = vld [vmem:[%s226 + $0xa08] sm:$0xff]
        %v559 = vld [vmem:[%s226 + $0xa10] sm:$0xff]
        %v560 = vld [vmem:[%s226 + $0xa18] sm:$0xff]
        %v561 = vld [vmem:[%s226 + $0xa20] sm:$0xff]
        %v562 = vld [vmem:[%s226 + $0xa28] sm:$0xff]
        %v563 = vld [vmem:[%s226 + $0xa30] sm:$0xff]
        %v564 = vld [vmem:[%s226 + $0xa38] sm:$0xff]
        %v565 = vld [vmem:[%s226 + $0xa40] sm:$0xff]
        %v566 = vld [vmem:[%s226 + $0xa48] sm:$0xff]
        %v567 = vld [vmem:[%s226 + $0xa50] sm:$0xff]
        %v568 = vld [vmem:[%s226 + $0xa58] sm:$0xff]
        %v569 = vld [vmem:[%s226 + $0xa60] sm:$0xff]
        %v570 = vld [vmem:[%s226 + $0xa68] sm:$0xff]
        %v571 = vld [vmem:[%s226 + $0xa70] sm:$0xff]
        %v572 = vld [vmem:[%s226 + $0xa78] sm:$0xff]
        %v573 = vld [vmem:[%s226 + $0xa80] sm:$0xff]
        %v574 = vld [vmem:[%s226 + $0xa88] sm:$0xff]
        %v575 = vld [vmem:[%s226 + $0xa90] sm:$0xff]
        %v576 = vld [vmem:[%s226 + $0xa98] sm:$0xff]
        %v577 = vld [vmem:[%s226 + $0xaa0] sm:$0xff]
        %v578 = vld [vmem:[%s226 + $0xaa8] sm:$0xff]
        %v579 = vld [vmem:[%s226 + $0xab0] sm:$0xff]
        %v580 = vld [vmem:[%s226 + $0xab8] sm:$0xff]
        %v581 = vld [vmem:[%s226 + $0xac0] sm:$0xff]
        %v582 = vld [vmem:[%s226 + $0xac8] sm:$0xff]
        %v583 = vld [vmem:[%s226 + $0xad0] sm:$0xff]
        %v584 = vld [vmem:[%s226 + $0xad8] sm:$0xff]
        %v585 = vld [vmem:[%s226 + $0xae0] sm:$0xff]
        %v586 = vld [vmem:[%s226 + $0xae8] sm:$0xff]
        %v587 = vld [vmem:[%s226 + $0xaf0] sm:$0xff]
        %v588 = vld [vmem:[%s226 + $0xaf8] sm:$0xff]
        %v589 = vld [vmem:[%s226 + $0xb00] sm:$0xff]
        %v590 = vld [vmem:[%s226 + $0xb08] sm:$0xff]
        %v591 = vld [vmem:[%s226 + $0xb10] sm:$0xff]
        %v592 = vld [vmem:[%s226 + $0xb18] sm:$0xff]
        %v593 = vld [vmem:[%s226 + $0xb20] sm:$0xff]
        %v594 = vld [vmem:[%s226 + $0xb28] sm:$0xff]
        %v595 = vld [vmem:[%s226 + $0xb30] sm:$0xff]
        %v596 = vld [vmem:[%s226 + $0xb38] sm:$0xff]
        %v597 = vld [vmem:[%s226 + $0xb40] sm:$0xff]
        %v598 = vld [vmem:[%s226 + $0xb48] sm:$0xff]
        %v599 = vld [vmem:[%s226 + $0xb50] sm:$0xff]
        %v600 = vld [vmem:[%s226 + $0xb58] sm:$0xff]
        %v601 = vld [vmem:[%s226 + $0xb60] sm:$0xff]
        %v602 = vld [vmem:[%s226 + $0xb68] sm:$0xff]
        %v603 = vld [vmem:[%s226 + $0xb70] sm:$0xff]
        %v604 = vld [vmem:[%s226 + $0xb78] sm:$0xff]
        %605 = vxpose.xlu0.b32.start [1/16] %v237, 128
        %606 = vxpose.xlu0.b32.cont [2/16] %v238, 128
        %607 = vxpose.xlu0.b32.cont [3/16] %v239, 128
        %608 = vxpose.xlu0.b32.cont [4/16] %v240, 128
        %609 = vxpose.xlu0.b32.cont [5/16] %v241, 128
        %610 = vxpose.xlu0.b32.cont [6/16] %v242, 128
        %611 = vxpose.xlu0.b32.cont [7/16] %v243, 128
        %612 = vxpose.xlu0.b32.cont [8/16] %v244, 128
        %613 = vxpose.xlu0.b32.cont [9/16] %v245, 128
        %614 = vxpose.xlu0.b32.cont [10/16] %v246, 128
        %615 = vxpose.xlu0.b32.cont [11/16] %v247, 128
        %616 = vxpose.xlu0.b32.cont [12/16] %v248, 128
        %617 = vxpose.xlu0.b32.cont [13/16] %v249, 128
        %618 = vxpose.xlu0.b32.cont [14/16] %v250, 128
        %619 = vxpose.xlu0.b32.cont [15/16] %v251, 128
        %620 = vxpose.xlu0.b32.end [16/16] %v252, 128
        %v621 = vpop.trf.xlu0
        %v622 = vpop.trf.xlu0
        %v623 = vpop.trf.xlu0
        %v624 = vpop.trf.xlu0
        %v625 = vpop.trf.xlu0
        %v626 = vpop.trf.xlu0
        %v627 = vpop.trf.xlu0
        %v628 = vpop.trf.xlu0
        %v629 = vpop.trf.xlu0
        %v630 = vpop.trf.xlu0
        %v631 = vpop.trf.xlu0
        %v632 = vpop.trf.xlu0
        %v633 = vpop.trf.xlu0
        %v634 = vpop.trf.xlu0
        %v635 = vpop.trf.xlu0
        %v636 = vpop.trf.xlu0
        %637 = vxpose.xlu0.b32.start [1/16] %v253, 128
        %638 = vxpose.xlu0.b32.cont [2/16] %v254, 128
        %639 = vxpose.xlu0.b32.cont [3/16] %v255, 128
        %640 = vxpose.xlu0.b32.cont [4/16] %v256, 128
        %641 = vxpose.xlu0.b32.cont [5/16] %v257, 128
        %642 = vxpose.xlu0.b32.cont [6/16] %v258, 128
        %643 = vxpose.xlu0.b32.cont [7/16] %v259, 128
        %644 = vxpose.xlu0.b32.cont [8/16] %v260, 128
        %645 = vxpose.xlu0.b32.cont [9/16] %v261, 128
        %646 = vxpose.xlu0.b32.cont [10/16] %v262, 128
        %647 = vxpose.xlu0.b32.cont [11/16] %v263, 128
        %648 = vxpose.xlu0.b32.cont [12/16] %v264, 128
        %649 = vxpose.xlu0.b32.cont [13/16] %v265, 128
        %650 = vxpose.xlu0.b32.cont [14/16] %v266, 128
        %651 = vxpose.xlu0.b32.cont [15/16] %v267, 128
        %652 = vxpose.xlu0.b32.end [16/16] %v268, 128
        %v653 = vpop.trf.xlu0
        %v654 = vpop.trf.xlu0
        %v655 = vpop.trf.xlu0
        %v656 = vpop.trf.xlu0
        %v657 = vpop.trf.xlu0
        %v658 = vpop.trf.xlu0
        %v659 = vpop.trf.xlu0
        %v660 = vpop.trf.xlu0
        %v661 = vpop.trf.xlu0
        %v662 = vpop.trf.xlu0
        %v663 = vpop.trf.xlu0
        %v664 = vpop.trf.xlu0
        %v665 = vpop.trf.xlu0
        %v666 = vpop.trf.xlu0
        %v667 = vpop.trf.xlu0
        %v668 = vpop.trf.xlu0
        %669 = vxpose.xlu0.b32.start [1/16] %v269, 128
        %670 = vxpose.xlu0.b32.cont [2/16] %v270, 128
        %671 = vxpose.xlu0.b32.cont [3/16] %v271, 128
        %672 = vxpose.xlu0.b32.cont [4/16] %v272, 128
        %673 = vxpose.xlu0.b32.cont [5/16] %v273, 128
        %674 = vxpose.xlu0.b32.cont [6/16] %v274, 128
        %675 = vxpose.xlu0.b32.cont [7/16] %v275, 128
        %676 = vxpose.xlu0.b32.cont [8/16] %v276, 128
        %677 = vxpose.xlu0.b32.cont [9/16] %v277, 128
        %678 = vxpose.xlu0.b32.cont [10/16] %v278, 128
        %679 = vxpose.xlu0.b32.cont [11/16] %v279, 128
        %680 = vxpose.xlu0.b32.cont [12/16] %v280, 128
        %681 = vxpose.xlu0.b32.cont [13/16] %v281, 128
        %682 = vxpose.xlu0.b32.cont [14/16] %v282, 128
        %683 = vxpose.xlu0.b32.cont [15/16] %v283, 128
        %684 = vxpose.xlu0.b32.end [16/16] %v284, 128
        %v685 = vpop.trf.xlu0
        %v686 = vpop.trf.xlu0
        %v687 = vpop.trf.xlu0
        %v688 = vpop.trf.xlu0
        %v689 = vpop.trf.xlu0
        %v690 = vpop.trf.xlu0
        %v691 = vpop.trf.xlu0
        %v692 = vpop.trf.xlu0
        %v693 = vpop.trf.xlu0
        %v694 = vpop.trf.xlu0
        %v695 = vpop.trf.xlu0
        %v696 = vpop.trf.xlu0
        %v697 = vpop.trf.xlu0
        %v698 = vpop.trf.xlu0
        %v699 = vpop.trf.xlu0
        %v700 = vpop.trf.xlu0
        %701 = vxpose.xlu0.b32.start [1/16] %v285, 128
        %702 = vxpose.xlu0.b32.cont [2/16] %v286, 128
        %703 = vxpose.xlu0.b32.cont [3/16] %v287, 128
        %704 = vxpose.xlu0.b32.cont [4/16] %v288, 128
        %705 = vxpose.xlu0.b32.cont [5/16] %v289, 128
        %706 = vxpose.xlu0.b32.cont [6/16] %v290, 128
        %707 = vxpose.xlu0.b32.cont [7/16] %v291, 128
        %708 = vxpose.xlu0.b32.cont [8/16] %v292, 128
        %709 = vxpose.xlu0.b32.cont [9/16] %v293, 128
        %710 = vxpose.xlu0.b32.cont [10/16] %v294, 128
        %711 = vxpose.xlu0.b32.cont [11/16] %v295, 128
        %712 = vxpose.xlu0.b32.cont [12/16] %v296, 128
        %713 = vxpose.xlu0.b32.cont [13/16] %v297, 128
        %714 = vxpose.xlu0.b32.cont [14/16] %v298, 128
        %715 = vxpose.xlu0.b32.cont [15/16] %v299, 128
        %716 = vxpose.xlu0.b32.end [16/16] %v300, 128
        %v717 = vpop.trf.xlu0
        %v718 = vpop.trf.xlu0
        %v719 = vpop.trf.xlu0
        %v720 = vpop.trf.xlu0
        %v721 = vpop.trf.xlu0
        %v722 = vpop.trf.xlu0
        %v723 = vpop.trf.xlu0
        %v724 = vpop.trf.xlu0
        %v725 = vpop.trf.xlu0
        %v726 = vpop.trf.xlu0
        %v727 = vpop.trf.xlu0
        %v728 = vpop.trf.xlu0
        %v729 = vpop.trf.xlu0
        %v730 = vpop.trf.xlu0
        %v731 = vpop.trf.xlu0
        %v732 = vpop.trf.xlu0
        %733 = vxpose.xlu0.b32.start [1/16] %v301, 128
        %734 = vxpose.xlu0.b32.cont [2/16] %v302, 128
        %735 = vxpose.xlu0.b32.cont [3/16] %v303, 128
        %736 = vxpose.xlu0.b32.cont [4/16] %v304, 128
        %737 = vxpose.xlu0.b32.cont [5/16] %v305, 128
        %738 = vxpose.xlu0.b32.cont [6/16] %v306, 128
        %739 = vxpose.xlu0.b32.cont [7/16] %v307, 128
        %740 = vxpose.xlu0.b32.cont [8/16] %v308, 128
        %741 = vxpose.xlu0.b32.cont [9/16] %v309, 128
        %742 = vxpose.xlu0.b32.cont [10/16] %v310, 128
        %743 = vxpose.xlu0.b32.cont [11/16] %v311, 128
        %744 = vxpose.xlu0.b32.cont [12/16] %v312, 128
        %745 = vxpose.xlu0.b32.cont [13/16] %v313, 128
        %746 = vxpose.xlu0.b32.cont [14/16] %v314, 128
        %747 = vxpose.xlu0.b32.cont [15/16] %v315, 128
        %748 = vxpose.xlu0.b32.end [16/16] %v316, 128
        %v749 = vpop.trf.xlu0
        %v750 = vpop.trf.xlu0
        %v751 = vpop.trf.xlu0
        %v752 = vpop.trf.xlu0
        %v753 = vpop.trf.xlu0
        %v754 = vpop.trf.xlu0
        %v755 = vpop.trf.xlu0
        %v756 = vpop.trf.xlu0
        %v757 = vpop.trf.xlu0
        %v758 = vpop.trf.xlu0
        %v759 = vpop.trf.xlu0
        %v760 = vpop.trf.xlu0
        %v761 = vpop.trf.xlu0
        %v762 = vpop.trf.xlu0
        %v763 = vpop.trf.xlu0
        %v764 = vpop.trf.xlu0
        %765 = vxpose.xlu0.b32.start [1/16] %v317, 128
        %766 = vxpose.xlu0.b32.cont [2/16] %v318, 128
        %767 = vxpose.xlu0.b32.cont [3/16] %v319, 128
        %768 = vxpose.xlu0.b32.cont [4/16] %v320, 128
        %769 = vxpose.xlu0.b32.cont [5/16] %v321, 128
        %770 = vxpose.xlu0.b32.cont [6/16] %v322, 128
        %771 = vxpose.xlu0.b32.cont [7/16] %v323, 128
        %772 = vxpose.xlu0.b32.cont [8/16] %v324, 128
        %773 = vxpose.xlu0.b32.cont [9/16] %v325, 128
        %774 = vxpose.xlu0.b32.cont [10/16] %v326, 128
        %775 = vxpose.xlu0.b32.cont [11/16] %v327, 128
        %776 = vxpose.xlu0.b32.cont [12/16] %v328, 128
        %777 = vxpose.xlu0.b32.cont [13/16] %v329, 128
        %778 = vxpose.xlu0.b32.cont [14/16] %v330, 128
        %779 = vxpose.xlu0.b32.cont [15/16] %v331, 128
        %780 = vxpose.xlu0.b32.end [16/16] %v332, 128
        %v781 = vpop.trf.xlu0
        %v782 = vpop.trf.xlu0
        %v783 = vpop.trf.xlu0
        %v784 = vpop.trf.xlu0
        %v785 = vpop.trf.xlu0
        %v786 = vpop.trf.xlu0
        %v787 = vpop.trf.xlu0
        %v788 = vpop.trf.xlu0
        %v789 = vpop.trf.xlu0
        %v790 = vpop.trf.xlu0
        %v791 = vpop.trf.xlu0
        %v792 = vpop.trf.xlu0
        %v793 = vpop.trf.xlu0
        %v794 = vpop.trf.xlu0
        %v795 = vpop.trf.xlu0
        %v796 = vpop.trf.xlu0
        %797 = vxpose.xlu0.b32.start [1/16] %v333, 128
        %798 = vxpose.xlu0.b32.cont [2/16] %v334, 128
        %799 = vxpose.xlu0.b32.cont [3/16] %v335, 128
        %800 = vxpose.xlu0.b32.cont [4/16] %v336, 128
        %801 = vxpose.xlu0.b32.cont [5/16] %v337, 128
        %802 = vxpose.xlu0.b32.cont [6/16] %v338, 128
        %803 = vxpose.xlu0.b32.cont [7/16] %v339, 128
        %804 = vxpose.xlu0.b32.cont [8/16] %v340, 128
        %805 = vxpose.xlu0.b32.cont [9/16] %v341, 128
        %806 = vxpose.xlu0.b32.cont [10/16] %v342, 128
        %807 = vxpose.xlu0.b32.cont [11/16] %v343, 128
        %808 = vxpose.xlu0.b32.cont [12/16] %v344, 128
        %809 = vxpose.xlu0.b32.cont [13/16] %v345, 128
        %810 = vxpose.xlu0.b32.cont [14/16] %v346, 128
        %811 = vxpose.xlu0.b32.cont [15/16] %v347, 128
        %812 = vxpose.xlu0.b32.end [16/16] %v348, 128
        %v813 = vpop.trf.xlu0
        %v814 = vpop.trf.xlu0
        %v815 = vpop.trf.xlu0
        %v816 = vpop.trf.xlu0
        %v817 = vpop.trf.xlu0
        %v818 = vpop.trf.xlu0
        %v819 = vpop.trf.xlu0
        %v820 = vpop.trf.xlu0
        %v821 = vpop.trf.xlu0
        %v822 = vpop.trf.xlu0
        %v823 = vpop.trf.xlu0
        %v824 = vpop.trf.xlu0
        %v825 = vpop.trf.xlu0
        %v826 = vpop.trf.xlu0
        %v827 = vpop.trf.xlu0
        %v828 = vpop.trf.xlu0
        %829 = vxpose.xlu0.b32.start [1/16] %v349, 128
        %830 = vxpose.xlu0.b32.cont [2/16] %v350, 128
        %831 = vxpose.xlu0.b32.cont [3/16] %v351, 128
        %832 = vxpose.xlu0.b32.cont [4/16] %v352, 128
        %833 = vxpose.xlu0.b32.cont [5/16] %v353, 128
        %834 = vxpose.xlu0.b32.cont [6/16] %v354, 128
        %835 = vxpose.xlu0.b32.cont [7/16] %v355, 128
        %836 = vxpose.xlu0.b32.cont [8/16] %v356, 128
        %837 = vxpose.xlu0.b32.cont [9/16] %v357, 128
        %838 = vxpose.xlu0.b32.cont [10/16] %v358, 128
        %839 = vxpose.xlu0.b32.cont [11/16] %v359, 128
        %840 = vxpose.xlu0.b32.cont [12/16] %v360, 128
        %841 = vxpose.xlu0.b32.cont [13/16] %v361, 128
        %842 = vxpose.xlu0.b32.cont [14/16] %v362, 128
        %843 = vxpose.xlu0.b32.cont [15/16] %v363, 128
        %844 = vxpose.xlu0.b32.end [16/16] %v364, 128
        %v845 = vpop.trf.xlu0
        %v846 = vpop.trf.xlu0
        %v847 = vpop.trf.xlu0
        %v848 = vpop.trf.xlu0
        %v849 = vpop.trf.xlu0
        %v850 = vpop.trf.xlu0
        %v851 = vpop.trf.xlu0
        %v852 = vpop.trf.xlu0
        %v853 = vpop.trf.xlu0
        %v854 = vpop.trf.xlu0
        %v855 = vpop.trf.xlu0
        %v856 = vpop.trf.xlu0
        %v857 = vpop.trf.xlu0
        %v858 = vpop.trf.xlu0
        %v859 = vpop.trf.xlu0
        %v860 = vpop.trf.xlu0
        %861 = vxpose.xlu0.b32.start [1/16] %v365, 128
        %862 = vxpose.xlu0.b32.cont [2/16] %v366, 128
        %863 = vxpose.xlu0.b32.cont [3/16] %v367, 128
        %864 = vxpose.xlu0.b32.cont [4/16] %v368, 128
        %865 = vxpose.xlu0.b32.cont [5/16] %v369, 128
        %866 = vxpose.xlu0.b32.cont [6/16] %v370, 128
        %867 = vxpose.xlu0.b32.cont [7/16] %v371, 128
        %868 = vxpose.xlu0.b32.cont [8/16] %v372, 128
        %869 = vxpose.xlu0.b32.cont [9/16] %v373, 128
        %870 = vxpose.xlu0.b32.cont [10/16] %v374, 128
        %871 = vxpose.xlu0.b32.cont [11/16] %v375, 128
        %872 = vxpose.xlu0.b32.cont [12/16] %v376, 128
        %873 = vxpose.xlu0.b32.cont [13/16] %v377, 128
        %874 = vxpose.xlu0.b32.cont [14/16] %v378, 128
        %875 = vxpose.xlu0.b32.cont [15/16] %v379, 128
        %876 = vxpose.xlu0.b32.end [16/16] %v380, 128
        %v877 = vpop.trf.xlu0
        %v878 = vpop.trf.xlu0
        %v879 = vpop.trf.xlu0
        %v880 = vpop.trf.xlu0
        %v881 = vpop.trf.xlu0
        %v882 = vpop.trf.xlu0
        %v883 = vpop.trf.xlu0
        %v884 = vpop.trf.xlu0
        %v885 = vpop.trf.xlu0
        %v886 = vpop.trf.xlu0
        %v887 = vpop.trf.xlu0
        %v888 = vpop.trf.xlu0
        %v889 = vpop.trf.xlu0
        %v890 = vpop.trf.xlu0
        %v891 = vpop.trf.xlu0
        %v892 = vpop.trf.xlu0
        %893 = vxpose.xlu0.b32.start [1/16] %v381, 128
        %894 = vxpose.xlu0.b32.cont [2/16] %v382, 128
        %895 = vxpose.xlu0.b32.cont [3/16] %v383, 128
        %896 = vxpose.xlu0.b32.cont [4/16] %v384, 128
        %897 = vxpose.xlu0.b32.cont [5/16] %v385, 128
        %898 = vxpose.xlu0.b32.cont [6/16] %v386, 128
        %899 = vxpose.xlu0.b32.cont [7/16] %v387, 128
        %900 = vxpose.xlu0.b32.cont [8/16] %v388, 128
        %901 = vxpose.xlu0.b32.cont [9/16] %v389, 128
        %902 = vxpose.xlu0.b32.cont [10/16] %v390, 128
        %903 = vxpose.xlu0.b32.cont [11/16] %v391, 128
        %904 = vxpose.xlu0.b32.cont [12/16] %v392, 128
        %905 = vxpose.xlu0.b32.cont [13/16] %v393, 128
        %906 = vxpose.xlu0.b32.cont [14/16] %v394, 128
        %907 = vxpose.xlu0.b32.cont [15/16] %v395, 128
        %908 = vxpose.xlu0.b32.end [16/16] %v396, 128
        %v909 = vpop.trf.xlu0
        %v910 = vpop.trf.xlu0
        %v911 = vpop.trf.xlu0
        %v912 = vpop.trf.xlu0
        %v913 = vpop.trf.xlu0
        %v914 = vpop.trf.xlu0
        %v915 = vpop.trf.xlu0
        %v916 = vpop.trf.xlu0
        %v917 = vpop.trf.xlu0
        %v918 = vpop.trf.xlu0
        %v919 = vpop.trf.xlu0
        %v920 = vpop.trf.xlu0
        %v921 = vpop.trf.xlu0
        %v922 = vpop.trf.xlu0
        %v923 = vpop.trf.xlu0
        %v924 = vpop.trf.xlu0
        %925 = vxpose.xlu0.b32.start [1/16] %v397, 128
        %926 = vxpose.xlu0.b32.cont [2/16] %v398, 128
        %927 = vxpose.xlu0.b32.cont [3/16] %v399, 128
        %928 = vxpose.xlu0.b32.cont [4/16] %v400, 128
        %929 = vxpose.xlu0.b32.cont [5/16] %v401, 128
        %930 = vxpose.xlu0.b32.cont [6/16] %v402, 128
        %931 = vxpose.xlu0.b32.cont [7/16] %v403, 128
        %932 = vxpose.xlu0.b32.cont [8/16] %v404, 128
        %933 = vxpose.xlu0.b32.cont [9/16] %v405, 128
        %934 = vxpose.xlu0.b32.cont [10/16] %v406, 128
        %935 = vxpose.xlu0.b32.cont [11/16] %v407, 128
        %936 = vxpose.xlu0.b32.cont [12/16] %v408, 128
        %937 = vxpose.xlu0.b32.cont [13/16] %v409, 128
        %938 = vxpose.xlu0.b32.cont [14/16] %v410, 128
        %939 = vxpose.xlu0.b32.cont [15/16] %v411, 128
        %940 = vxpose.xlu0.b32.end [16/16] %v412, 128
        %v941 = vpop.trf.xlu0
        %v942 = vpop.trf.xlu0
        %v943 = vpop.trf.xlu0
        %v944 = vpop.trf.xlu0
        %v945 = vpop.trf.xlu0
        %v946 = vpop.trf.xlu0
        %v947 = vpop.trf.xlu0
        %v948 = vpop.trf.xlu0
        %v949 = vpop.trf.xlu0
        %v950 = vpop.trf.xlu0
        %v951 = vpop.trf.xlu0
        %v952 = vpop.trf.xlu0
        %v953 = vpop.trf.xlu0
        %v954 = vpop.trf.xlu0
        %v955 = vpop.trf.xlu0
        %v956 = vpop.trf.xlu0
        %957 = vxpose.xlu0.b32.start [1/16] %v413, 128
        %958 = vxpose.xlu0.b32.cont [2/16] %v414, 128
        %959 = vxpose.xlu0.b32.cont [3/16] %v415, 128
        %960 = vxpose.xlu0.b32.cont [4/16] %v416, 128
        %961 = vxpose.xlu0.b32.cont [5/16] %v417, 128
        %962 = vxpose.xlu0.b32.cont [6/16] %v418, 128
        %963 = vxpose.xlu0.b32.cont [7/16] %v419, 128
        %964 = vxpose.xlu0.b32.cont [8/16] %v420, 128
        %965 = vxpose.xlu0.b32.cont [9/16] %v421, 128
        %966 = vxpose.xlu0.b32.cont [10/16] %v422, 128
        %967 = vxpose.xlu0.b32.cont [11/16] %v423, 128
        %968 = vxpose.xlu0.b32.cont [12/16] %v424, 128
        %969 = vxpose.xlu0.b32.cont [13/16] %v425, 128
        %970 = vxpose.xlu0.b32.cont [14/16] %v426, 128
        %971 = vxpose.xlu0.b32.cont [15/16] %v427, 128
        %972 = vxpose.xlu0.b32.end [16/16] %v428, 128
        %v973 = vpop.trf.xlu0
        %v974 = vpop.trf.xlu0
        %v975 = vpop.trf.xlu0
        %v976 = vpop.trf.xlu0
        %v977 = vpop.trf.xlu0
        %v978 = vpop.trf.xlu0
        %v979 = vpop.trf.xlu0
        %v980 = vpop.trf.xlu0
        %v981 = vpop.trf.xlu0
        %v982 = vpop.trf.xlu0
        %v983 = vpop.trf.xlu0
        %v984 = vpop.trf.xlu0
        %v985 = vpop.trf.xlu0
        %v986 = vpop.trf.xlu0
        %v987 = vpop.trf.xlu0
        %v988 = vpop.trf.xlu0
        %989 = vxpose.xlu0.b32.start [1/16] %v429, 128
        %990 = vxpose.xlu0.b32.cont [2/16] %v430, 128
        %991 = vxpose.xlu0.b32.cont [3/16] %v431, 128
        %992 = vxpose.xlu0.b32.cont [4/16] %v432, 128
        %993 = vxpose.xlu0.b32.cont [5/16] %v433, 128
        %994 = vxpose.xlu0.b32.cont [6/16] %v434, 128
        %995 = vxpose.xlu0.b32.cont [7/16] %v435, 128
        %996 = vxpose.xlu0.b32.cont [8/16] %v436, 128
        %997 = vxpose.xlu0.b32.cont [9/16] %v437, 128
        %998 = vxpose.xlu0.b32.cont [10/16] %v438, 128
        %999 = vxpose.xlu0.b32.cont [11/16] %v439, 128
        %1000 = vxpose.xlu0.b32.cont [12/16] %v440, 128
        %1001 = vxpose.xlu0.b32.cont [13/16] %v441, 128
        %1002 = vxpose.xlu0.b32.cont [14/16] %v442, 128
        %1003 = vxpose.xlu0.b32.cont [15/16] %v443, 128
        %1004 = vxpose.xlu0.b32.end [16/16] %v444, 128
        %v1005 = vpop.trf.xlu0
        %v1006 = vpop.trf.xlu0
        %v1007 = vpop.trf.xlu0
        %v1008 = vpop.trf.xlu0
        %v1009 = vpop.trf.xlu0
        %v1010 = vpop.trf.xlu0
        %v1011 = vpop.trf.xlu0
        %v1012 = vpop.trf.xlu0
        %v1013 = vpop.trf.xlu0
        %v1014 = vpop.trf.xlu0
        %v1015 = vpop.trf.xlu0
        %v1016 = vpop.trf.xlu0
        %v1017 = vpop.trf.xlu0
        %v1018 = vpop.trf.xlu0
        %v1019 = vpop.trf.xlu0
        %v1020 = vpop.trf.xlu0
        %1021 = vxpose.xlu0.b32.start [1/16] %v445, 128
        %1022 = vxpose.xlu0.b32.cont [2/16] %v446, 128
        %1023 = vxpose.xlu0.b32.cont [3/16] %v447, 128
        %1024 = vxpose.xlu0.b32.cont [4/16] %v448, 128
        %1025 = vxpose.xlu0.b32.cont [5/16] %v449, 128
        %1026 = vxpose.xlu0.b32.cont [6/16] %v450, 128
        %1027 = vxpose.xlu0.b32.cont [7/16] %v451, 128
        %1028 = vxpose.xlu0.b32.cont [8/16] %v452, 128
        %1029 = vxpose.xlu0.b32.cont [9/16] %v453, 128
        %1030 = vxpose.xlu0.b32.cont [10/16] %v454, 128
        %1031 = vxpose.xlu0.b32.cont [11/16] %v455, 128
        %1032 = vxpose.xlu0.b32.cont [12/16] %v456, 128
        %1033 = vxpose.xlu0.b32.cont [13/16] %v457, 128
        %1034 = vxpose.xlu0.b32.cont [14/16] %v458, 128
        %1035 = vxpose.xlu0.b32.cont [15/16] %v459, 128
        %1036 = vxpose.xlu0.b32.end [16/16] %v460, 128
        %v1037 = vpop.trf.xlu0
        %v1038 = vpop.trf.xlu0
        %v1039 = vpop.trf.xlu0
        %v1040 = vpop.trf.xlu0
        %v1041 = vpop.trf.xlu0
        %v1042 = vpop.trf.xlu0
        %v1043 = vpop.trf.xlu0
        %v1044 = vpop.trf.xlu0
        %v1045 = vpop.trf.xlu0
        %v1046 = vpop.trf.xlu0
        %v1047 = vpop.trf.xlu0
        %v1048 = vpop.trf.xlu0
        %v1049 = vpop.trf.xlu0
        %v1050 = vpop.trf.xlu0
        %v1051 = vpop.trf.xlu0
        %v1052 = vpop.trf.xlu0
        %1053 = vxpose.xlu0.b32.start [1/16] %v461, 128
        %1054 = vxpose.xlu0.b32.cont [2/16] %v462, 128
        %1055 = vxpose.xlu0.b32.cont [3/16] %v463, 128
        %1056 = vxpose.xlu0.b32.cont [4/16] %v464, 128
        %1057 = vxpose.xlu0.b32.cont [5/16] %v465, 128
        %1058 = vxpose.xlu0.b32.cont [6/16] %v466, 128
        %1059 = vxpose.xlu0.b32.cont [7/16] %v467, 128
        %1060 = vxpose.xlu0.b32.cont [8/16] %v468, 128
        %1061 = vxpose.xlu0.b32.cont [9/16] %v469, 128
        %1062 = vxpose.xlu0.b32.cont [10/16] %v470, 128
        %1063 = vxpose.xlu0.b32.cont [11/16] %v471, 128
        %1064 = vxpose.xlu0.b32.cont [12/16] %v472, 128
        %1065 = vxpose.xlu0.b32.cont [13/16] %v473, 128
        %1066 = vxpose.xlu0.b32.cont [14/16] %v474, 128
        %1067 = vxpose.xlu0.b32.cont [15/16] %v475, 128
        %1068 = vxpose.xlu0.b32.end [16/16] %v476, 128
        %v1069 = vpop.trf.xlu0
        %v1070 = vpop.trf.xlu0
        %v1071 = vpop.trf.xlu0
        %v1072 = vpop.trf.xlu0
        %v1073 = vpop.trf.xlu0
        %v1074 = vpop.trf.xlu0
        %v1075 = vpop.trf.xlu0
        %v1076 = vpop.trf.xlu0
        %v1077 = vpop.trf.xlu0
        %v1078 = vpop.trf.xlu0
        %v1079 = vpop.trf.xlu0
        %v1080 = vpop.trf.xlu0
        %v1081 = vpop.trf.xlu0
        %v1082 = vpop.trf.xlu0
        %v1083 = vpop.trf.xlu0
        %v1084 = vpop.trf.xlu0
        %1085 = vxpose.xlu0.b32.start [1/16] %v477, 128
        %1086 = vxpose.xlu0.b32.cont [2/16] %v478, 128
        %1087 = vxpose.xlu0.b32.cont [3/16] %v479, 128
        %1088 = vxpose.xlu0.b32.cont [4/16] %v480, 128
        %1089 = vxpose.xlu0.b32.cont [5/16] %v481, 128
        %1090 = vxpose.xlu0.b32.cont [6/16] %v482, 128
        %1091 = vxpose.xlu0.b32.cont [7/16] %v483, 128
        %1092 = vxpose.xlu0.b32.cont [8/16] %v484, 128
        %1093 = vxpose.xlu0.b32.cont [9/16] %v485, 128
        %1094 = vxpose.xlu0.b32.cont [10/16] %v486, 128
        %1095 = vxpose.xlu0.b32.cont [11/16] %v487, 128
        %1096 = vxpose.xlu0.b32.cont [12/16] %v488, 128
        %1097 = vxpose.xlu0.b32.cont [13/16] %v489, 128
        %1098 = vxpose.xlu0.b32.cont [14/16] %v490, 128
        %1099 = vxpose.xlu0.b32.cont [15/16] %v491, 128
        %1100 = vxpose.xlu0.b32.end [16/16] %v492, 128
        %v1101 = vpop.trf.xlu0
        %v1102 = vpop.trf.xlu0
        %v1103 = vpop.trf.xlu0
        %v1104 = vpop.trf.xlu0
        %v1105 = vpop.trf.xlu0
        %v1106 = vpop.trf.xlu0
        %v1107 = vpop.trf.xlu0
        %v1108 = vpop.trf.xlu0
        %v1109 = vpop.trf.xlu0
        %v1110 = vpop.trf.xlu0
        %v1111 = vpop.trf.xlu0
        %v1112 = vpop.trf.xlu0
        %v1113 = vpop.trf.xlu0
        %v1114 = vpop.trf.xlu0
        %v1115 = vpop.trf.xlu0
        %v1116 = vpop.trf.xlu0
        %1117 = vxpose.xlu0.b32.start [1/16] %v493, 128
        %1118 = vxpose.xlu0.b32.cont [2/16] %v494, 128
        %1119 = vxpose.xlu0.b32.cont [3/16] %v495, 128
        %1120 = vxpose.xlu0.b32.cont [4/16] %v496, 128
        %1121 = vxpose.xlu0.b32.cont [5/16] %v497, 128
        %1122 = vxpose.xlu0.b32.cont [6/16] %v498, 128
        %1123 = vxpose.xlu0.b32.cont [7/16] %v499, 128
        %1124 = vxpose.xlu0.b32.cont [8/16] %v500, 128
        %1125 = vxpose.xlu0.b32.cont [9/16] %v501, 128
        %1126 = vxpose.xlu0.b32.cont [10/16] %v502, 128
        %1127 = vxpose.xlu0.b32.cont [11/16] %v503, 128
        %1128 = vxpose.xlu0.b32.cont [12/16] %v504, 128
        %1129 = vxpose.xlu0.b32.cont [13/16] %v505, 128
        %1130 = vxpose.xlu0.b32.cont [14/16] %v506, 128
        %1131 = vxpose.xlu0.b32.cont [15/16] %v507, 128
        %1132 = vxpose.xlu0.b32.end [16/16] %v508, 128
        %v1133 = vpop.trf.xlu0
        %v1134 = vpop.trf.xlu0
        %v1135 = vpop.trf.xlu0
        %v1136 = vpop.trf.xlu0
        %v1137 = vpop.trf.xlu0
        %v1138 = vpop.trf.xlu0
        %v1139 = vpop.trf.xlu0
        %v1140 = vpop.trf.xlu0
        %v1141 = vpop.trf.xlu0
        %v1142 = vpop.trf.xlu0
        %v1143 = vpop.trf.xlu0
        %v1144 = vpop.trf.xlu0
        %v1145 = vpop.trf.xlu0
        %v1146 = vpop.trf.xlu0
        %v1147 = vpop.trf.xlu0
        %v1148 = vpop.trf.xlu0
        %1149 = vxpose.xlu0.b32.start [1/16] %v509, 128
        %1150 = vxpose.xlu0.b32.cont [2/16] %v510, 128
        %1151 = vxpose.xlu0.b32.cont [3/16] %v511, 128
        %1152 = vxpose.xlu0.b32.cont [4/16] %v512, 128
        %1153 = vxpose.xlu0.b32.cont [5/16] %v513, 128
        %1154 = vxpose.xlu0.b32.cont [6/16] %v514, 128
        %1155 = vxpose.xlu0.b32.cont [7/16] %v515, 128
        %1156 = vxpose.xlu0.b32.cont [8/16] %v516, 128
        %1157 = vxpose.xlu0.b32.cont [9/16] %v517, 128
        %1158 = vxpose.xlu0.b32.cont [10/16] %v518, 128
        %1159 = vxpose.xlu0.b32.cont [11/16] %v519, 128
        %1160 = vxpose.xlu0.b32.cont [12/16] %v520, 128
        %1161 = vxpose.xlu0.b32.cont [13/16] %v521, 128
        %1162 = vxpose.xlu0.b32.cont [14/16] %v522, 128
        %1163 = vxpose.xlu0.b32.cont [15/16] %v523, 128
        %1164 = vxpose.xlu0.b32.end [16/16] %v524, 128
        %v1165 = vpop.trf.xlu0
        %v1166 = vpop.trf.xlu0
        %v1167 = vpop.trf.xlu0
        %v1168 = vpop.trf.xlu0
        %v1169 = vpop.trf.xlu0
        %v1170 = vpop.trf.xlu0
        %v1171 = vpop.trf.xlu0
        %v1172 = vpop.trf.xlu0
        %v1173 = vpop.trf.xlu0
        %v1174 = vpop.trf.xlu0
        %v1175 = vpop.trf.xlu0
        %v1176 = vpop.trf.xlu0
        %v1177 = vpop.trf.xlu0
        %v1178 = vpop.trf.xlu0
        %v1179 = vpop.trf.xlu0
        %v1180 = vpop.trf.xlu0
        %1181 = vxpose.xlu0.b32.start [1/16] %v525, 128
        %1182 = vxpose.xlu0.b32.cont [2/16] %v526, 128
        %1183 = vxpose.xlu0.b32.cont [3/16] %v527, 128
        %1184 = vxpose.xlu0.b32.cont [4/16] %v528, 128
        %1185 = vxpose.xlu0.b32.cont [5/16] %v529, 128
        %1186 = vxpose.xlu0.b32.cont [6/16] %v530, 128
        %1187 = vxpose.xlu0.b32.cont [7/16] %v531, 128
        %1188 = vxpose.xlu0.b32.cont [8/16] %v532, 128
        %1189 = vxpose.xlu0.b32.cont [9/16] %v533, 128
        %1190 = vxpose.xlu0.b32.cont [10/16] %v534, 128
        %1191 = vxpose.xlu0.b32.cont [11/16] %v535, 128
        %1192 = vxpose.xlu0.b32.cont [12/16] %v536, 128
        %1193 = vxpose.xlu0.b32.cont [13/16] %v537, 128
        %1194 = vxpose.xlu0.b32.cont [14/16] %v538, 128
        %1195 = vxpose.xlu0.b32.cont [15/16] %v539, 128
        %1196 = vxpose.xlu0.b32.end [16/16] %v540, 128
        %v1197 = vpop.trf.xlu0
        %v1198 = vpop.trf.xlu0
        %v1199 = vpop.trf.xlu0
        %v1200 = vpop.trf.xlu0
        %v1201 = vpop.trf.xlu0
        %v1202 = vpop.trf.xlu0
        %v1203 = vpop.trf.xlu0
        %v1204 = vpop.trf.xlu0
        %v1205 = vpop.trf.xlu0
        %v1206 = vpop.trf.xlu0
        %v1207 = vpop.trf.xlu0
        %v1208 = vpop.trf.xlu0
        %v1209 = vpop.trf.xlu0
        %v1210 = vpop.trf.xlu0
        %v1211 = vpop.trf.xlu0
        %v1212 = vpop.trf.xlu0
        %1213 = vxpose.xlu0.b32.start [1/16] %v541, 128
        %1214 = vxpose.xlu0.b32.cont [2/16] %v542, 128
        %1215 = vxpose.xlu0.b32.cont [3/16] %v543, 128
        %1216 = vxpose.xlu0.b32.cont [4/16] %v544, 128
        %1217 = vxpose.xlu0.b32.cont [5/16] %v545, 128
        %1218 = vxpose.xlu0.b32.cont [6/16] %v546, 128
        %1219 = vxpose.xlu0.b32.cont [7/16] %v547, 128
        %1220 = vxpose.xlu0.b32.cont [8/16] %v548, 128
        %1221 = vxpose.xlu0.b32.cont [9/16] %v549, 128
        %1222 = vxpose.xlu0.b32.cont [10/16] %v550, 128
        %1223 = vxpose.xlu0.b32.cont [11/16] %v551, 128
        %1224 = vxpose.xlu0.b32.cont [12/16] %v552, 128
        %1225 = vxpose.xlu0.b32.cont [13/16] %v553, 128
        %1226 = vxpose.xlu0.b32.cont [14/16] %v554, 128
        %1227 = vxpose.xlu0.b32.cont [15/16] %v555, 128
        %1228 = vxpose.xlu0.b32.end [16/16] %v556, 128
        %v1229 = vpop.trf.xlu0
        %v1230 = vpop.trf.xlu0
        %v1231 = vpop.trf.xlu0
        %v1232 = vpop.trf.xlu0
        %v1233 = vpop.trf.xlu0
        %v1234 = vpop.trf.xlu0
        %v1235 = vpop.trf.xlu0
        %v1236 = vpop.trf.xlu0
        %v1237 = vpop.trf.xlu0
        %v1238 = vpop.trf.xlu0
        %v1239 = vpop.trf.xlu0
        %v1240 = vpop.trf.xlu0
        %v1241 = vpop.trf.xlu0
        %v1242 = vpop.trf.xlu0
        %v1243 = vpop.trf.xlu0
        %v1244 = vpop.trf.xlu0
        %1245 = vxpose.xlu0.b32.start [1/16] %v557, 128
        %1246 = vxpose.xlu0.b32.cont [2/16] %v558, 128
        %1247 = vxpose.xlu0.b32.cont [3/16] %v559, 128
        %1248 = vxpose.xlu0.b32.cont [4/16] %v560, 128
        %1249 = vxpose.xlu0.b32.cont [5/16] %v561, 128
        %1250 = vxpose.xlu0.b32.cont [6/16] %v562, 128
        %1251 = vxpose.xlu0.b32.cont [7/16] %v563, 128
        %1252 = vxpose.xlu0.b32.cont [8/16] %v564, 128
        %1253 = vxpose.xlu0.b32.cont [9/16] %v565, 128
        %1254 = vxpose.xlu0.b32.cont [10/16] %v566, 128
        %1255 = vxpose.xlu0.b32.cont [11/16] %v567, 128
        %1256 = vxpose.xlu0.b32.cont [12/16] %v568, 128
        %1257 = vxpose.xlu0.b32.cont [13/16] %v569, 128
        %1258 = vxpose.xlu0.b32.cont [14/16] %v570, 128
        %1259 = vxpose.xlu0.b32.cont [15/16] %v571, 128
        %1260 = vxpose.xlu0.b32.end [16/16] %v572, 128
        %v1261 = vpop.trf.xlu0
        %v1262 = vpop.trf.xlu0
        %v1263 = vpop.trf.xlu0
        %v1264 = vpop.trf.xlu0
        %v1265 = vpop.trf.xlu0
        %v1266 = vpop.trf.xlu0
        %v1267 = vpop.trf.xlu0
        %v1268 = vpop.trf.xlu0
        %v1269 = vpop.trf.xlu0
        %v1270 = vpop.trf.xlu0
        %v1271 = vpop.trf.xlu0
        %v1272 = vpop.trf.xlu0
        %v1273 = vpop.trf.xlu0
        %v1274 = vpop.trf.xlu0
        %v1275 = vpop.trf.xlu0
        %v1276 = vpop.trf.xlu0
        %1277 = vxpose.xlu0.b32.start [1/16] %v573, 128
        %1278 = vxpose.xlu0.b32.cont [2/16] %v574, 128
        %1279 = vxpose.xlu0.b32.cont [3/16] %v575, 128
        %1280 = vxpose.xlu0.b32.cont [4/16] %v576, 128
        %1281 = vxpose.xlu0.b32.cont [5/16] %v577, 128
        %1282 = vxpose.xlu0.b32.cont [6/16] %v578, 128
        %1283 = vxpose.xlu0.b32.cont [7/16] %v579, 128
        %1284 = vxpose.xlu0.b32.cont [8/16] %v580, 128
        %1285 = vxpose.xlu0.b32.cont [9/16] %v581, 128
        %1286 = vxpose.xlu0.b32.cont [10/16] %v582, 128
        %1287 = vxpose.xlu0.b32.cont [11/16] %v583, 128
        %1288 = vxpose.xlu0.b32.cont [12/16] %v584, 128
        %1289 = vxpose.xlu0.b32.cont [13/16] %v585, 128
        %1290 = vxpose.xlu0.b32.cont [14/16] %v586, 128
        %1291 = vxpose.xlu0.b32.cont [15/16] %v587, 128
        %1292 = vxpose.xlu0.b32.end [16/16] %v588, 128
        %v1293 = vpop.trf.xlu0
        %v1294 = vpop.trf.xlu0
        %v1295 = vpop.trf.xlu0
        %v1296 = vpop.trf.xlu0
        %v1297 = vpop.trf.xlu0
        %v1298 = vpop.trf.xlu0
        %v1299 = vpop.trf.xlu0
        %v1300 = vpop.trf.xlu0
        %v1301 = vpop.trf.xlu0
        %v1302 = vpop.trf.xlu0
        %v1303 = vpop.trf.xlu0
        %v1304 = vpop.trf.xlu0
        %v1305 = vpop.trf.xlu0
        %v1306 = vpop.trf.xlu0
        %v1307 = vpop.trf.xlu0
        %v1308 = vpop.trf.xlu0
        %1309 = vxpose.xlu0.b32.start [1/16] %v589, 128
        %1310 = vxpose.xlu0.b32.cont [2/16] %v590, 128
        %1311 = vxpose.xlu0.b32.cont [3/16] %v591, 128
        %1312 = vxpose.xlu0.b32.cont [4/16] %v592, 128
        %1313 = vxpose.xlu0.b32.cont [5/16] %v593, 128
        %1314 = vxpose.xlu0.b32.cont [6/16] %v594, 128
        %1315 = vxpose.xlu0.b32.cont [7/16] %v595, 128
        %1316 = vxpose.xlu0.b32.cont [8/16] %v596, 128
        %1317 = vxpose.xlu0.b32.cont [9/16] %v597, 128
        %1318 = vxpose.xlu0.b32.cont [10/16] %v598, 128
        %1319 = vxpose.xlu0.b32.cont [11/16] %v599, 128
        %1320 = vxpose.xlu0.b32.cont [12/16] %v600, 128
        %1321 = vxpose.xlu0.b32.cont [13/16] %v601, 128
        %1322 = vxpose.xlu0.b32.cont [14/16] %v602, 128
        %1323 = vxpose.xlu0.b32.cont [15/16] %v603, 128
        %1324 = vxpose.xlu0.b32.end [16/16] %v604, 128
        %v1325 = vpop.trf.xlu0
        %v1326 = vpop.trf.xlu0
        %v1327 = vpop.trf.xlu0
        %v1328 = vpop.trf.xlu0
        %v1329 = vpop.trf.xlu0
        %v1330 = vpop.trf.xlu0
        %v1331 = vpop.trf.xlu0
        %v1332 = vpop.trf.xlu0
        %v1333 = vpop.trf.xlu0
        %v1334 = vpop.trf.xlu0
        %v1335 = vpop.trf.xlu0
        %v1336 = vpop.trf.xlu0
        %v1337 = vpop.trf.xlu0
        %v1338 = vpop.trf.xlu0
        %v1339 = vpop.trf.xlu0
        %v1340 = vpop.trf.xlu0
        %v1341 = vld [vmem:[%s1] sm:$0xff]
        %v1342 = vld [vmem:[%s2] sm:$0xff]
        %s1343 = sld [smem:[#allocation2]]
        %s1344 = sld [smem:[#allocation2 + $0x1]]
        %s1345 = sld [smem:[#allocation2 + $0x2]]
        %s1346 = sld [smem:[#allocation2 + $0x3]]
        %s1347 = sld [smem:[#allocation2 + $0x4]]
        %s1348 = sld [smem:[#allocation2 + $0x5]]
        %1350 = vset.pattern.permute.xlu0 0
        %1351 = vperm.xlu0 %1350, %v1341
        %v1352 = vpop.permute.xlu0 %1351
        %v1354 = vsub.f32 %v621, %v1352
        %v1355 = vsub.f32 %v653, %v1352
        %v1356 = vsub.f32 %v685, %v1352
        %v1357 = vsub.f32 %v717, %v1352
        %v1358 = vsub.f32 %v749, %v1352
        %v1359 = vsub.f32 %v781, %v1352
        %v1360 = vsub.f32 %v813, %v1352
        %v1361 = vsub.f32 %v845, %v1352
        %v1362 = vsub.f32 %v877, %v1352
        %v1363 = vsub.f32 %v909, %v1352
        %v1364 = vsub.f32 %v941, %v1352
        %v1365 = vsub.f32 %v973, %v1352
        %v1366 = vsub.f32 %v1005, %v1352
        %v1367 = vsub.f32 %v1037, %v1352
        %v1368 = vsub.f32 %v1069, %v1352
        %v1369 = vsub.f32 %v1101, %v1352
        %v1370 = vsub.f32 %v1133, %v1352
        %v1371 = vsub.f32 %v1165, %v1352
        %v1372 = vsub.f32 %v1197, %v1352
        %v1373 = vsub.f32 %v1229, %v1352
        %v1374 = vsub.f32 %v1261, %v1352
        %v1375 = vsub.f32 %v1293, %v1352
        %v1376 = vsub.f32 %v1325, %v1352
        %v1377 = vmul.f32 %v1354, %v1354
        %v1378 = vmul.f32 %v1355, %v1355
        %v1379 = vmul.f32 %v1356, %v1356
        %v1380 = vmul.f32 %v1357, %v1357
        %v1381 = vmul.f32 %v1358, %v1358
        %v1382 = vmul.f32 %v1359, %v1359
        %v1383 = vmul.f32 %v1360, %v1360
        %v1384 = vmul.f32 %v1361, %v1361
        %v1385 = vmul.f32 %v1362, %v1362
        %v1386 = vmul.f32 %v1363, %v1363
        %v1387 = vmul.f32 %v1364, %v1364
        %v1388 = vmul.f32 %v1365, %v1365
        %v1389 = vmul.f32 %v1366, %v1366
        %v1390 = vmul.f32 %v1367, %v1367
        %v1391 = vmul.f32 %v1368, %v1368
        %v1392 = vmul.f32 %v1369, %v1369
        %v1393 = vmul.f32 %v1370, %v1370
        %v1394 = vmul.f32 %v1371, %v1371
        %v1395 = vmul.f32 %v1372, %v1372
        %v1396 = vmul.f32 %v1373, %v1373
        %v1397 = vmul.f32 %v1374, %v1374
        %v1398 = vmul.f32 %v1375, %v1375
        %v1399 = vmul.f32 %v1376, %v1376
        %v1423 = vrot.slane %v1377, 1
        %v1424 = vrot.slane %v1378, 1
        %v1425 = vrot.slane %v1379, 1
        %v1426 = vrot.slane %v1380, 1
        %v1427 = vrot.slane %v1381, 1
        %v1428 = vrot.slane %v1382, 1
        %v1429 = vrot.slane %v1383, 1
        %v1430 = vrot.slane %v1384, 1
        %v1431 = vrot.slane %v1385, 1
        %v1432 = vrot.slane %v1386, 1
        %v1433 = vrot.slane %v1387, 1
        %v1434 = vrot.slane %v1388, 1
        %v1435 = vrot.slane %v1389, 1
        %v1436 = vrot.slane %v1390, 1
        %v1437 = vrot.slane %v1391, 1
        %v1438 = vrot.slane %v1392, 1
        %v1439 = vrot.slane %v1393, 1
        %v1440 = vrot.slane %v1394, 1
        %v1441 = vrot.slane %v1395, 1
        %v1442 = vrot.slane %v1396, 1
        %v1443 = vrot.slane %v1397, 1
        %v1444 = vrot.slane %v1398, 1
        %v1445 = vrot.slane %v1399, 1
        %v1469 = vadd.f32 %v1377, %v1423
        %v1470 = vadd.f32 %v1378, %v1424
        %v1471 = vadd.f32 %v1379, %v1425
        %v1472 = vadd.f32 %v1380, %v1426
        %v1473 = vadd.f32 %v1381, %v1427
        %v1474 = vadd.f32 %v1382, %v1428
        %v1475 = vadd.f32 %v1383, %v1429
        %v1476 = vadd.f32 %v1384, %v1430
        %v1477 = vadd.f32 %v1385, %v1431
        %v1478 = vadd.f32 %v1386, %v1432
        %v1479 = vadd.f32 %v1387, %v1433
        %v1480 = vadd.f32 %v1388, %v1434
        %v1481 = vadd.f32 %v1389, %v1435
        %v1482 = vadd.f32 %v1390, %v1436
        %v1483 = vadd.f32 %v1391, %v1437
        %v1484 = vadd.f32 %v1392, %v1438
        %v1485 = vadd.f32 %v1393, %v1439
        %v1486 = vadd.f32 %v1394, %v1440
        %v1487 = vadd.f32 %v1395, %v1441
        %v1488 = vadd.f32 %v1396, %v1442
        %v1489 = vadd.f32 %v1397, %v1443
        %v1490 = vadd.f32 %v1398, %v1444
        %v1491 = vadd.f32 %v1399, %v1445
        %v1492 = vrot.slane %v1377, 2
        %v1493 = vrot.slane %v1378, 2
        %v1494 = vrot.slane %v1379, 2
        %v1495 = vrot.slane %v1380, 2
        %v1496 = vrot.slane %v1381, 2
        %v1497 = vrot.slane %v1382, 2
        %v1498 = vrot.slane %v1383, 2
        %v1499 = vrot.slane %v1384, 2
        %v1500 = vrot.slane %v1385, 2
        %v1501 = vrot.slane %v1386, 2
        %v1502 = vrot.slane %v1387, 2
        %v1503 = vrot.slane %v1388, 2
        %v1504 = vrot.slane %v1389, 2
        %v1505 = vrot.slane %v1390, 2
        %v1506 = vrot.slane %v1391, 2
        %v1507 = vrot.slane %v1392, 2
        %v1508 = vrot.slane %v1393, 2
        %v1509 = vrot.slane %v1394, 2
        %v1510 = vrot.slane %v1395, 2
        %v1511 = vrot.slane %v1396, 2
        %v1512 = vrot.slane %v1397, 2
        %v1513 = vrot.slane %v1398, 2
        %v1514 = vrot.slane %v1399, 2
        %vm1538 = vcmask 1045504
        %v1539 = vsel %vm1538, %v1492, 0.0
        %v1540 = vrot.slane %v1539, 4
        %v1541 = vadd.f32 %v1539, %v1540
        %v1542 = vrot.slane %v1541, 2
        %v1543 = vadd.f32 %v1541, %v1542
        %v1544 = vrot.slane %v1543, 1
        %v1545 = vadd.f32 %v1543, %v1544
        %v1546 = vsel %vm1538, %v1493, 0.0
        %v1547 = vrot.slane %v1546, 4
        %v1548 = vadd.f32 %v1546, %v1547
        %v1549 = vrot.slane %v1548, 2
        %v1550 = vadd.f32 %v1548, %v1549
        %v1551 = vrot.slane %v1550, 1
        %v1552 = vadd.f32 %v1550, %v1551
        %v1553 = vsel %vm1538, %v1494, 0.0
        %v1554 = vrot.slane %v1553, 4
        %v1555 = vadd.f32 %v1553, %v1554
        %v1556 = vrot.slane %v1555, 2
        %v1557 = vadd.f32 %v1555, %v1556
        %v1558 = vrot.slane %v1557, 1
        %v1559 = vadd.f32 %v1557, %v1558
        %v1560 = vsel %vm1538, %v1495, 0.0
        %v1561 = vrot.slane %v1560, 4
        %v1562 = vadd.f32 %v1560, %v1561
        %v1563 = vrot.slane %v1562, 2
        %v1564 = vadd.f32 %v1562, %v1563
        %v1565 = vrot.slane %v1564, 1
        %v1566 = vadd.f32 %v1564, %v1565
        %v1567 = vsel %vm1538, %v1496, 0.0
        %v1568 = vrot.slane %v1567, 4
        %v1569 = vadd.f32 %v1567, %v1568
        %v1570 = vrot.slane %v1569, 2
        %v1571 = vadd.f32 %v1569, %v1570
        %v1572 = vrot.slane %v1571, 1
        %v1573 = vadd.f32 %v1571, %v1572
        %v1574 = vsel %vm1538, %v1497, 0.0
        %v1575 = vrot.slane %v1574, 4
        %v1576 = vadd.f32 %v1574, %v1575
        %v1577 = vrot.slane %v1576, 2
        %v1578 = vadd.f32 %v1576, %v1577
        %v1579 = vrot.slane %v1578, 1
        %v1580 = vadd.f32 %v1578, %v1579
        %v1581 = vsel %vm1538, %v1498, 0.0
        %v1582 = vrot.slane %v1581, 4
        %v1583 = vadd.f32 %v1581, %v1582
        %v1584 = vrot.slane %v1583, 2
        %v1585 = vadd.f32 %v1583, %v1584
        %v1586 = vrot.slane %v1585, 1
        %v1587 = vadd.f32 %v1585, %v1586
        %v1588 = vsel %vm1538, %v1499, 0.0
        %v1589 = vrot.slane %v1588, 4
        %v1590 = vadd.f32 %v1588, %v1589
        %v1591 = vrot.slane %v1590, 2
        %v1592 = vadd.f32 %v1590, %v1591
        %v1593 = vrot.slane %v1592, 1
        %v1594 = vadd.f32 %v1592, %v1593
        %v1595 = vsel %vm1538, %v1500, 0.0
        %v1596 = vrot.slane %v1595, 4
        %v1597 = vadd.f32 %v1595, %v1596
        %v1598 = vrot.slane %v1597, 2
        %v1599 = vadd.f32 %v1597, %v1598
        %v1600 = vrot.slane %v1599, 1
        %v1601 = vadd.f32 %v1599, %v1600
        %v1602 = vsel %vm1538, %v1501, 0.0
        %v1603 = vrot.slane %v1602, 4
        %v1604 = vadd.f32 %v1602, %v1603
        %v1605 = vrot.slane %v1604, 2
        %v1606 = vadd.f32 %v1604, %v1605
        %v1607 = vrot.slane %v1606, 1
        %v1608 = vadd.f32 %v1606, %v1607
        %v1609 = vsel %vm1538, %v1502, 0.0
        %v1610 = vrot.slane %v1609, 4
        %v1611 = vadd.f32 %v1609, %v1610
        %v1612 = vrot.slane %v1611, 2
        %v1613 = vadd.f32 %v1611, %v1612
        %v1614 = vrot.slane %v1613, 1
        %v1615 = vadd.f32 %v1613, %v1614
        %v1616 = vsel %vm1538, %v1503, 0.0
        %v1617 = vrot.slane %v1616, 4
        %v1618 = vadd.f32 %v1616, %v1617
        %v1619 = vrot.slane %v1618, 2
        %v1620 = vadd.f32 %v1618, %v1619
        %v1621 = vrot.slane %v1620, 1
        %v1622 = vadd.f32 %v1620, %v1621
        %v1623 = vsel %vm1538, %v1504, 0.0
        %v1624 = vrot.slane %v1623, 4
        %v1625 = vadd.f32 %v1623, %v1624
        %v1626 = vrot.slane %v1625, 2
        %v1627 = vadd.f32 %v1625, %v1626
        %v1628 = vrot.slane %v1627, 1
        %v1629 = vadd.f32 %v1627, %v1628
        %v1630 = vsel %vm1538, %v1505, 0.0
        %v1631 = vrot.slane %v1630, 4
        %v1632 = vadd.f32 %v1630, %v1631
        %v1633 = vrot.slane %v1632, 2
        %v1634 = vadd.f32 %v1632, %v1633
        %v1635 = vrot.slane %v1634, 1
        %v1636 = vadd.f32 %v1634, %v1635
        %v1637 = vsel %vm1538, %v1506, 0.0
        %v1638 = vrot.slane %v1637, 4
        %v1639 = vadd.f32 %v1637, %v1638
        %v1640 = vrot.slane %v1639, 2
        %v1641 = vadd.f32 %v1639, %v1640
        %v1642 = vrot.slane %v1641, 1
        %v1643 = vadd.f32 %v1641, %v1642
        %v1644 = vsel %vm1538, %v1507, 0.0
        %v1645 = vrot.slane %v1644, 4
        %v1646 = vadd.f32 %v1644, %v1645
        %v1647 = vrot.slane %v1646, 2
        %v1648 = vadd.f32 %v1646, %v1647
        %v1649 = vrot.slane %v1648, 1
        %v1650 = vadd.f32 %v1648, %v1649
        %v1651 = vsel %vm1538, %v1508, 0.0
        %v1652 = vrot.slane %v1651, 4
        %v1653 = vadd.f32 %v1651, %v1652
        %v1654 = vrot.slane %v1653, 2
        %v1655 = vadd.f32 %v1653, %v1654
        %v1656 = vrot.slane %v1655, 1
        %v1657 = vadd.f32 %v1655, %v1656
        %v1658 = vsel %vm1538, %v1509, 0.0
        %v1659 = vrot.slane %v1658, 4
        %v1660 = vadd.f32 %v1658, %v1659
        %v1661 = vrot.slane %v1660, 2
        %v1662 = vadd.f32 %v1660, %v1661
        %v1663 = vrot.slane %v1662, 1
        %v1664 = vadd.f32 %v1662, %v1663
        %v1665 = vsel %vm1538, %v1510, 0.0
        %v1666 = vrot.slane %v1665, 4
        %v1667 = vadd.f32 %v1665, %v1666
        %v1668 = vrot.slane %v1667, 2
        %v1669 = vadd.f32 %v1667, %v1668
        %v1670 = vrot.slane %v1669, 1
        %v1671 = vadd.f32 %v1669, %v1670
        %v1672 = vsel %vm1538, %v1511, 0.0
        %v1673 = vrot.slane %v1672, 4
        %v1674 = vadd.f32 %v1672, %v1673
        %v1675 = vrot.slane %v1674, 2
        %v1676 = vadd.f32 %v1674, %v1675
        %v1677 = vrot.slane %v1676, 1
        %v1678 = vadd.f32 %v1676, %v1677
        %v1679 = vsel %vm1538, %v1512, 0.0
        %v1680 = vrot.slane %v1679, 4
        %v1681 = vadd.f32 %v1679, %v1680
        %v1682 = vrot.slane %v1681, 2
        %v1683 = vadd.f32 %v1681, %v1682
        %v1684 = vrot.slane %v1683, 1
        %v1685 = vadd.f32 %v1683, %v1684
        %v1686 = vsel %vm1538, %v1513, 0.0
        %v1687 = vrot.slane %v1686, 4
        %v1688 = vadd.f32 %v1686, %v1687
        %v1689 = vrot.slane %v1688, 2
        %v1690 = vadd.f32 %v1688, %v1689
        %v1691 = vrot.slane %v1690, 1
        %v1692 = vadd.f32 %v1690, %v1691
        %v1693 = vsel %vm1538, %v1514, 0.0
        %v1694 = vrot.slane %v1693, 4
        %v1695 = vadd.f32 %v1693, %v1694
        %v1696 = vrot.slane %v1695, 2
        %v1697 = vadd.f32 %v1695, %v1696
        %v1698 = vrot.slane %v1697, 1
        %v1699 = vadd.f32 %v1697, %v1698
        %v1700 = vadd.f32 %v1469, %v1545
        %v1701 = vadd.f32 %v1470, %v1552
        %v1702 = vadd.f32 %v1471, %v1559
        %v1703 = vadd.f32 %v1472, %v1566
        %v1704 = vadd.f32 %v1473, %v1573
        %v1705 = vadd.f32 %v1474, %v1580
        %v1706 = vadd.f32 %v1475, %v1587
        %v1707 = vadd.f32 %v1476, %v1594
        %v1708 = vadd.f32 %v1477, %v1601
        %v1709 = vadd.f32 %v1478, %v1608
        %v1710 = vadd.f32 %v1479, %v1615
        %v1711 = vadd.f32 %v1480, %v1622
        %v1712 = vadd.f32 %v1481, %v1629
        %v1713 = vadd.f32 %v1482, %v1636
        %v1714 = vadd.f32 %v1483, %v1643
        %v1715 = vadd.f32 %v1484, %v1650
        %v1716 = vadd.f32 %v1485, %v1657
        %v1717 = vadd.f32 %v1486, %v1664
        %v1718 = vadd.f32 %v1487, %v1671
        %v1719 = vadd.f32 %v1488, %v1678
        %v1720 = vadd.f32 %v1489, %v1685
        %v1721 = vadd.f32 %v1490, %v1692
        %v1722 = vadd.f32 %v1491, %v1699
        %v1723 = vadd.f32 %v1469, 1e-08
        %v1724 = vadd.f32 %v1470, 1e-08
        %v1725 = vadd.f32 %v1471, 1e-08
        %v1726 = vadd.f32 %v1472, 1e-08
        %v1727 = vadd.f32 %v1473, 1e-08
        %v1728 = vadd.f32 %v1474, 1e-08
        %v1729 = vadd.f32 %v1475, 1e-08
        %v1730 = vadd.f32 %v1476, 1e-08
        %v1731 = vadd.f32 %v1477, 1e-08
        %v1732 = vadd.f32 %v1478, 1e-08
        %v1733 = vadd.f32 %v1479, 1e-08
        %v1734 = vadd.f32 %v1480, 1e-08
        %v1735 = vadd.f32 %v1481, 1e-08
        %v1736 = vadd.f32 %v1482, 1e-08
        %v1737 = vadd.f32 %v1483, 1e-08
        %v1738 = vadd.f32 %v1484, 1e-08
        %v1739 = vadd.f32 %v1485, 1e-08
        %v1740 = vadd.f32 %v1486, 1e-08
        %v1741 = vadd.f32 %v1487, 1e-08
        %v1742 = vadd.f32 %v1488, 1e-08
        %v1743 = vadd.f32 %v1489, 1e-08
        %v1744 = vadd.f32 %v1490, 1e-08
        %v1745 = vadd.f32 %v1491, 1e-08
        %v1746 = vrsqrt.pop %v1723
        %v1747 = vmul.f32 %v1723, %v1746
        %vm1748 = vcmp.eq.f32.partialorder %v1723, inf
        %v1749 = vsel %vm1748, %v1723, %v1747
        %vm1750 = vcmp.eq.f32.partialorder %v1723, 0.0
        %v1751 = vand.u32 %v1723, 2147483648
        %v1752 = vsel %vm1750, %v1751, %v1749
        %v1753 = vrsqrt.pop %v1724
        %v1754 = vmul.f32 %v1724, %v1753
        %vm1755 = vcmp.eq.f32.partialorder %v1724, inf
        %v1756 = vsel %vm1755, %v1724, %v1754
        %vm1757 = vcmp.eq.f32.partialorder %v1724, 0.0
        %v1758 = vand.u32 %v1724, 2147483648
        %v1759 = vsel %vm1757, %v1758, %v1756
        %v1760 = vrsqrt.pop %v1725
        %v1761 = vmul.f32 %v1725, %v1760
        %vm1762 = vcmp.eq.f32.partialorder %v1725, inf
        %v1763 = vsel %vm1762, %v1725, %v1761
        %vm1764 = vcmp.eq.f32.partialorder %v1725, 0.0
        %v1765 = vand.u32 %v1725, 2147483648
        %v1766 = vsel %vm1764, %v1765, %v1763
        %v1767 = vrsqrt.pop %v1726
        %v1768 = vmul.f32 %v1726, %v1767
        %vm1769 = vcmp.eq.f32.partialorder %v1726, inf
        %v1770 = vsel %vm1769, %v1726, %v1768
        %vm1771 = vcmp.eq.f32.partialorder %v1726, 0.0
        %v1772 = vand.u32 %v1726, 2147483648
        %v1773 = vsel %vm1771, %v1772, %v1770
        %v1774 = vrsqrt.pop %v1727
        %v1775 = vmul.f32 %v1727, %v1774
        %vm1776 = vcmp.eq.f32.partialorder %v1727, inf
        %v1777 = vsel %vm1776, %v1727, %v1775
        %vm1778 = vcmp.eq.f32.partialorder %v1727, 0.0
        %v1779 = vand.u32 %v1727, 2147483648
        %v1780 = vsel %vm1778, %v1779, %v1777
        %v1781 = vrsqrt.pop %v1728
        %v1782 = vmul.f32 %v1728, %v1781
        %vm1783 = vcmp.eq.f32.partialorder %v1728, inf
        %v1784 = vsel %vm1783, %v1728, %v1782
        %vm1785 = vcmp.eq.f32.partialorder %v1728, 0.0
        %v1786 = vand.u32 %v1728, 2147483648
        %v1787 = vsel %vm1785, %v1786, %v1784
        %v1788 = vrsqrt.pop %v1729
        %v1789 = vmul.f32 %v1729, %v1788
        %vm1790 = vcmp.eq.f32.partialorder %v1729, inf
        %v1791 = vsel %vm1790, %v1729, %v1789
        %vm1792 = vcmp.eq.f32.partialorder %v1729, 0.0
        %v1793 = vand.u32 %v1729, 2147483648
        %v1794 = vsel %vm1792, %v1793, %v1791
        %v1795 = vrsqrt.pop %v1730
        %v1796 = vmul.f32 %v1730, %v1795
        %vm1797 = vcmp.eq.f32.partialorder %v1730, inf
        %v1798 = vsel %vm1797, %v1730, %v1796
        %vm1799 = vcmp.eq.f32.partialorder %v1730, 0.0
        %v1800 = vand.u32 %v1730, 2147483648
        %v1801 = vsel %vm1799, %v1800, %v1798
        %v1802 = vrsqrt.pop %v1731
        %v1803 = vmul.f32 %v1731, %v1802
        %vm1804 = vcmp.eq.f32.partialorder %v1731, inf
        %v1805 = vsel %vm1804, %v1731, %v1803
        %vm1806 = vcmp.eq.f32.partialorder %v1731, 0.0
        %v1807 = vand.u32 %v1731, 2147483648
        %v1808 = vsel %vm1806, %v1807, %v1805
        %v1809 = vrsqrt.pop %v1732
        %v1810 = vmul.f32 %v1732, %v1809
        %vm1811 = vcmp.eq.f32.partialorder %v1732, inf
        %v1812 = vsel %vm1811, %v1732, %v1810
        %vm1813 = vcmp.eq.f32.partialorder %v1732, 0.0
        %v1814 = vand.u32 %v1732, 2147483648
        %v1815 = vsel %vm1813, %v1814, %v1812
        %v1816 = vrsqrt.pop %v1733
        %v1817 = vmul.f32 %v1733, %v1816
        %vm1818 = vcmp.eq.f32.partialorder %v1733, inf
        %v1819 = vsel %vm1818, %v1733, %v1817
        %vm1820 = vcmp.eq.f32.partialorder %v1733, 0.0
        %v1821 = vand.u32 %v1733, 2147483648
        %v1822 = vsel %vm1820, %v1821, %v1819
        %v1823 = vrsqrt.pop %v1734
        %v1824 = vmul.f32 %v1734, %v1823
        %vm1825 = vcmp.eq.f32.partialorder %v1734, inf
        %v1826 = vsel %vm1825, %v1734, %v1824
        %vm1827 = vcmp.eq.f32.partialorder %v1734, 0.0
        %v1828 = vand.u32 %v1734, 2147483648
        %v1829 = vsel %vm1827, %v1828, %v1826
        %v1830 = vrsqrt.pop %v1735
        %v1831 = vmul.f32 %v1735, %v1830
        %vm1832 = vcmp.eq.f32.partialorder %v1735, inf
        %v1833 = vsel %vm1832, %v1735, %v1831
        %vm1834 = vcmp.eq.f32.partialorder %v1735, 0.0
        %v1835 = vand.u32 %v1735, 2147483648
        %v1836 = vsel %vm1834, %v1835, %v1833
        %v1837 = vrsqrt.pop %v1736
        %v1838 = vmul.f32 %v1736, %v1837
        %vm1839 = vcmp.eq.f32.partialorder %v1736, inf
        %v1840 = vsel %vm1839, %v1736, %v1838
        %vm1841 = vcmp.eq.f32.partialorder %v1736, 0.0
        %v1842 = vand.u32 %v1736, 2147483648
        %v1843 = vsel %vm1841, %v1842, %v1840
        %v1844 = vrsqrt.pop %v1737
        %v1845 = vmul.f32 %v1737, %v1844
        %vm1846 = vcmp.eq.f32.partialorder %v1737, inf
        %v1847 = vsel %vm1846, %v1737, %v1845
        %vm1848 = vcmp.eq.f32.partialorder %v1737, 0.0
        %v1849 = vand.u32 %v1737, 2147483648
        %v1850 = vsel %vm1848, %v1849, %v1847
        %v1851 = vrsqrt.pop %v1738
        %v1852 = vmul.f32 %v1738, %v1851
        %vm1853 = vcmp.eq.f32.partialorder %v1738, inf
        %v1854 = vsel %vm1853, %v1738, %v1852
        %vm1855 = vcmp.eq.f32.partialorder %v1738, 0.0
        %v1856 = vand.u32 %v1738, 2147483648
        %v1857 = vsel %vm1855, %v1856, %v1854
        %v1858 = vrsqrt.pop %v1739
        %v1859 = vmul.f32 %v1739, %v1858
        %vm1860 = vcmp.eq.f32.partialorder %v1739, inf
        %v1861 = vsel %vm1860, %v1739, %v1859
        %vm1862 = vcmp.eq.f32.partialorder %v1739, 0.0
        %v1863 = vand.u32 %v1739, 2147483648
        %v1864 = vsel %vm1862, %v1863, %v1861
        %v1865 = vrsqrt.pop %v1740
        %v1866 = vmul.f32 %v1740, %v1865
        %vm1867 = vcmp.eq.f32.partialorder %v1740, inf
        %v1868 = vsel %vm1867, %v1740, %v1866
        %vm1869 = vcmp.eq.f32.partialorder %v1740, 0.0
        %v1870 = vand.u32 %v1740, 2147483648
        %v1871 = vsel %vm1869, %v1870, %v1868
        %v1872 = vrsqrt.pop %v1741
        %v1873 = vmul.f32 %v1741, %v1872
        %vm1874 = vcmp.eq.f32.partialorder %v1741, inf
        %v1875 = vsel %vm1874, %v1741, %v1873
        %vm1876 = vcmp.eq.f32.partialorder %v1741, 0.0
        %v1877 = vand.u32 %v1741, 2147483648
        %v1878 = vsel %vm1876, %v1877, %v1875
        %v1879 = vrsqrt.pop %v1742
        %v1880 = vmul.f32 %v1742, %v1879
        %vm1881 = vcmp.eq.f32.partialorder %v1742, inf
        %v1882 = vsel %vm1881, %v1742, %v1880
        %vm1883 = vcmp.eq.f32.partialorder %v1742, 0.0
        %v1884 = vand.u32 %v1742, 2147483648
        %v1885 = vsel %vm1883, %v1884, %v1882
        %v1886 = vrsqrt.pop %v1743
        %v1887 = vmul.f32 %v1743, %v1886
        %vm1888 = vcmp.eq.f32.partialorder %v1743, inf
        %v1889 = vsel %vm1888, %v1743, %v1887
        %vm1890 = vcmp.eq.f32.partialorder %v1743, 0.0
        %v1891 = vand.u32 %v1743, 2147483648
        %v1892 = vsel %vm1890, %v1891, %v1889
        %v1893 = vrsqrt.pop %v1744
        %v1894 = vmul.f32 %v1744, %v1893
        %vm1895 = vcmp.eq.f32.partialorder %v1744, inf
        %v1896 = vsel %vm1895, %v1744, %v1894
        %vm1897 = vcmp.eq.f32.partialorder %v1744, 0.0
        %v1898 = vand.u32 %v1744, 2147483648
        %v1899 = vsel %vm1897, %v1898, %v1896
        %v1900 = vrsqrt.pop %v1745
        %v1901 = vmul.f32 %v1745, %v1900
        %vm1902 = vcmp.eq.f32.partialorder %v1745, inf
        %v1903 = vsel %vm1902, %v1745, %v1901
        %vm1904 = vcmp.eq.f32.partialorder %v1745, 0.0
        %v1905 = vand.u32 %v1745, 2147483648
        %v1906 = vsel %vm1904, %v1905, %v1903
        %v1907 = vstv %s1343
        %v1908 = vsub.f32 %v1752, %v1907
        %v1909 = vsub.f32 %v1759, %v1907
        %v1910 = vsub.f32 %v1766, %v1907
        %v1911 = vsub.f32 %v1773, %v1907
        %v1912 = vsub.f32 %v1780, %v1907
        %v1913 = vsub.f32 %v1787, %v1907
        %v1914 = vsub.f32 %v1794, %v1907
        %v1915 = vsub.f32 %v1801, %v1907
        %v1916 = vsub.f32 %v1808, %v1907
        %v1917 = vsub.f32 %v1815, %v1907
        %v1918 = vsub.f32 %v1822, %v1907
        %v1919 = vsub.f32 %v1829, %v1907
        %v1920 = vsub.f32 %v1836, %v1907
        %v1921 = vsub.f32 %v1843, %v1907
        %v1922 = vsub.f32 %v1850, %v1907
        %v1923 = vsub.f32 %v1857, %v1907
        %v1924 = vsub.f32 %v1864, %v1907
        %v1925 = vsub.f32 %v1871, %v1907
        %v1926 = vsub.f32 %v1878, %v1907
        %v1927 = vsub.f32 %v1885, %v1907
        %v1928 = vsub.f32 %v1892, %v1907
        %v1929 = vsub.f32 %v1899, %v1907
        %v1930 = vsub.f32 %v1906, %v1907
        %v1931 = vmul.f32 %v1908, %v1908
        %v1932 = vmul.f32 %v1909, %v1909
        %v1933 = vmul.f32 %v1910, %v1910
        %v1934 = vmul.f32 %v1911, %v1911
        %v1935 = vmul.f32 %v1912, %v1912
        %v1936 = vmul.f32 %v1913, %v1913
        %v1937 = vmul.f32 %v1914, %v1914
        %v1938 = vmul.f32 %v1915, %v1915
        %v1939 = vmul.f32 %v1916, %v1916
        %v1940 = vmul.f32 %v1917, %v1917
        %v1941 = vmul.f32 %v1918, %v1918
        %v1942 = vmul.f32 %v1919, %v1919
        %v1943 = vmul.f32 %v1920, %v1920
        %v1944 = vmul.f32 %v1921, %v1921
        %v1945 = vmul.f32 %v1922, %v1922
        %v1946 = vmul.f32 %v1923, %v1923
        %v1947 = vmul.f32 %v1924, %v1924
        %v1948 = vmul.f32 %v1925, %v1925
        %v1949 = vmul.f32 %v1926, %v1926
        %v1950 = vmul.f32 %v1927, %v1927
        %v1951 = vmul.f32 %v1928, %v1928
        %v1952 = vmul.f32 %v1929, %v1929
        %v1953 = vmul.f32 %v1930, %v1930
        %v1954 = vadd.f32 %v1931, %v1545
        %v1955 = vadd.f32 %v1932, %v1552
        %v1956 = vadd.f32 %v1933, %v1559
        %v1957 = vadd.f32 %v1934, %v1566
        %v1958 = vadd.f32 %v1935, %v1573
        %v1959 = vadd.f32 %v1936, %v1580
        %v1960 = vadd.f32 %v1937, %v1587
        %v1961 = vadd.f32 %v1938, %v1594
        %v1962 = vadd.f32 %v1939, %v1601
        %v1963 = vadd.f32 %v1940, %v1608
        %v1964 = vadd.f32 %v1941, %v1615
        %v1965 = vadd.f32 %v1942, %v1622
        %v1966 = vadd.f32 %v1943, %v1629
        %v1967 = vadd.f32 %v1944, %v1636
        %v1968 = vadd.f32 %v1945, %v1643
        %v1969 = vadd.f32 %v1946, %v1650
        %v1970 = vadd.f32 %v1947, %v1657
        %v1971 = vadd.f32 %v1948, %v1664
        %v1972 = vadd.f32 %v1949, %v1671
        %v1973 = vadd.f32 %v1950, %v1678
        %v1974 = vadd.f32 %v1951, %v1685
        %v1975 = vadd.f32 %v1952, %v1692
        %v1976 = vadd.f32 %v1953, %v1699
        %v1977 = vadd.f32 %v1954, 1e-08
        %v1978 = vadd.f32 %v1955, 1e-08
        %v1979 = vadd.f32 %v1956, 1e-08
        %v1980 = vadd.f32 %v1957, 1e-08
        %v1981 = vadd.f32 %v1958, 1e-08
        %v1982 = vadd.f32 %v1959, 1e-08
        %v1983 = vadd.f32 %v1960, 1e-08
        %v1984 = vadd.f32 %v1961, 1e-08
        %v1985 = vadd.f32 %v1962, 1e-08
        %v1986 = vadd.f32 %v1963, 1e-08
        %v1987 = vadd.f32 %v1964, 1e-08
        %v1988 = vadd.f32 %v1965, 1e-08
        %v1989 = vadd.f32 %v1966, 1e-08
        %v1990 = vadd.f32 %v1967, 1e-08
        %v1991 = vadd.f32 %v1968, 1e-08
        %v1992 = vadd.f32 %v1969, 1e-08
        %v1993 = vadd.f32 %v1970, 1e-08
        %v1994 = vadd.f32 %v1971, 1e-08
        %v1995 = vadd.f32 %v1972, 1e-08
        %v1996 = vadd.f32 %v1973, 1e-08
        %v1997 = vadd.f32 %v1974, 1e-08
        %v1998 = vadd.f32 %v1975, 1e-08
        %v1999 = vadd.f32 %v1976, 1e-08
        %v2000 = vrsqrt.pop %v1977
        %v2001 = vmul.f32 %v1977, %v2000
        %vm2002 = vcmp.eq.f32.partialorder %v1977, inf
        %v2003 = vsel %vm2002, %v1977, %v2001
        %vm2004 = vcmp.eq.f32.partialorder %v1977, 0.0
        %v2005 = vand.u32 %v1977, 2147483648
        %v2006 = vsel %vm2004, %v2005, %v2003
        %v2007 = vrsqrt.pop %v1978
        %v2008 = vmul.f32 %v1978, %v2007
        %vm2009 = vcmp.eq.f32.partialorder %v1978, inf
        %v2010 = vsel %vm2009, %v1978, %v2008
        %vm2011 = vcmp.eq.f32.partialorder %v1978, 0.0
        %v2012 = vand.u32 %v1978, 2147483648
        %v2013 = vsel %vm2011, %v2012, %v2010
        %v2014 = vrsqrt.pop %v1979
        %v2015 = vmul.f32 %v1979, %v2014
        %vm2016 = vcmp.eq.f32.partialorder %v1979, inf
        %v2017 = vsel %vm2016, %v1979, %v2015
        %vm2018 = vcmp.eq.f32.partialorder %v1979, 0.0
        %v2019 = vand.u32 %v1979, 2147483648
        %v2020 = vsel %vm2018, %v2019, %v2017
        %v2021 = vrsqrt.pop %v1980
        %v2022 = vmul.f32 %v1980, %v2021
        %vm2023 = vcmp.eq.f32.partialorder %v1980, inf
        %v2024 = vsel %vm2023, %v1980, %v2022
        %vm2025 = vcmp.eq.f32.partialorder %v1980, 0.0
        %v2026 = vand.u32 %v1980, 2147483648
        %v2027 = vsel %vm2025, %v2026, %v2024
        %v2028 = vrsqrt.pop %v1981
        %v2029 = vmul.f32 %v1981, %v2028
        %vm2030 = vcmp.eq.f32.partialorder %v1981, inf
        %v2031 = vsel %vm2030, %v1981, %v2029
        %vm2032 = vcmp.eq.f32.partialorder %v1981, 0.0
        %v2033 = vand.u32 %v1981, 2147483648
        %v2034 = vsel %vm2032, %v2033, %v2031
        %v2035 = vrsqrt.pop %v1982
        %v2036 = vmul.f32 %v1982, %v2035
        %vm2037 = vcmp.eq.f32.partialorder %v1982, inf
        %v2038 = vsel %vm2037, %v1982, %v2036
        %vm2039 = vcmp.eq.f32.partialorder %v1982, 0.0
        %v2040 = vand.u32 %v1982, 2147483648
        %v2041 = vsel %vm2039, %v2040, %v2038
        %v2042 = vrsqrt.pop %v1983
        %v2043 = vmul.f32 %v1983, %v2042
        %vm2044 = vcmp.eq.f32.partialorder %v1983, inf
        %v2045 = vsel %vm2044, %v1983, %v2043
        %vm2046 = vcmp.eq.f32.partialorder %v1983, 0.0
        %v2047 = vand.u32 %v1983, 2147483648
        %v2048 = vsel %vm2046, %v2047, %v2045
        %v2049 = vrsqrt.pop %v1984
        %v2050 = vmul.f32 %v1984, %v2049
        %vm2051 = vcmp.eq.f32.partialorder %v1984, inf
        %v2052 = vsel %vm2051, %v1984, %v2050
        %vm2053 = vcmp.eq.f32.partialorder %v1984, 0.0
        %v2054 = vand.u32 %v1984, 2147483648
        %v2055 = vsel %vm2053, %v2054, %v2052
        %v2056 = vrsqrt.pop %v1985
        %v2057 = vmul.f32 %v1985, %v2056
        %vm2058 = vcmp.eq.f32.partialorder %v1985, inf
        %v2059 = vsel %vm2058, %v1985, %v2057
        %vm2060 = vcmp.eq.f32.partialorder %v1985, 0.0
        %v2061 = vand.u32 %v1985, 2147483648
        %v2062 = vsel %vm2060, %v2061, %v2059
        %v2063 = vrsqrt.pop %v1986
        %v2064 = vmul.f32 %v1986, %v2063
        %vm2065 = vcmp.eq.f32.partialorder %v1986, inf
        %v2066 = vsel %vm2065, %v1986, %v2064
        %vm2067 = vcmp.eq.f32.partialorder %v1986, 0.0
        %v2068 = vand.u32 %v1986, 2147483648
        %v2069 = vsel %vm2067, %v2068, %v2066
        %v2070 = vrsqrt.pop %v1987
        %v2071 = vmul.f32 %v1987, %v2070
        %vm2072 = vcmp.eq.f32.partialorder %v1987, inf
        %v2073 = vsel %vm2072, %v1987, %v2071
        %vm2074 = vcmp.eq.f32.partialorder %v1987, 0.0
        %v2075 = vand.u32 %v1987, 2147483648
        %v2076 = vsel %vm2074, %v2075, %v2073
        %v2077 = vrsqrt.pop %v1988
        %v2078 = vmul.f32 %v1988, %v2077
        %vm2079 = vcmp.eq.f32.partialorder %v1988, inf
        %v2080 = vsel %vm2079, %v1988, %v2078
        %vm2081 = vcmp.eq.f32.partialorder %v1988, 0.0
        %v2082 = vand.u32 %v1988, 2147483648
        %v2083 = vsel %vm2081, %v2082, %v2080
        %v2084 = vrsqrt.pop %v1989
        %v2085 = vmul.f32 %v1989, %v2084
        %vm2086 = vcmp.eq.f32.partialorder %v1989, inf
        %v2087 = vsel %vm2086, %v1989, %v2085
        %vm2088 = vcmp.eq.f32.partialorder %v1989, 0.0
        %v2089 = vand.u32 %v1989, 2147483648
        %v2090 = vsel %vm2088, %v2089, %v2087
        %v2091 = vrsqrt.pop %v1990
        %v2092 = vmul.f32 %v1990, %v2091
        %vm2093 = vcmp.eq.f32.partialorder %v1990, inf
        %v2094 = vsel %vm2093, %v1990, %v2092
        %vm2095 = vcmp.eq.f32.partialorder %v1990, 0.0
        %v2096 = vand.u32 %v1990, 2147483648
        %v2097 = vsel %vm2095, %v2096, %v2094
        %v2098 = vrsqrt.pop %v1991
        %v2099 = vmul.f32 %v1991, %v2098
        %vm2100 = vcmp.eq.f32.partialorder %v1991, inf
        %v2101 = vsel %vm2100, %v1991, %v2099
        %vm2102 = vcmp.eq.f32.partialorder %v1991, 0.0
        %v2103 = vand.u32 %v1991, 2147483648
        %v2104 = vsel %vm2102, %v2103, %v2101
        %v2105 = vrsqrt.pop %v1992
        %v2106 = vmul.f32 %v1992, %v2105
        %vm2107 = vcmp.eq.f32.partialorder %v1992, inf
        %v2108 = vsel %vm2107, %v1992, %v2106
        %vm2109 = vcmp.eq.f32.partialorder %v1992, 0.0
        %v2110 = vand.u32 %v1992, 2147483648
        %v2111 = vsel %vm2109, %v2110, %v2108
        %v2112 = vrsqrt.pop %v1993
        %v2113 = vmul.f32 %v1993, %v2112
        %vm2114 = vcmp.eq.f32.partialorder %v1993, inf
        %v2115 = vsel %vm2114, %v1993, %v2113
        %vm2116 = vcmp.eq.f32.partialorder %v1993, 0.0
        %v2117 = vand.u32 %v1993, 2147483648
        %v2118 = vsel %vm2116, %v2117, %v2115
        %v2119 = vrsqrt.pop %v1994
        %v2120 = vmul.f32 %v1994, %v2119
        %vm2121 = vcmp.eq.f32.partialorder %v1994, inf
        %v2122 = vsel %vm2121, %v1994, %v2120
        %vm2123 = vcmp.eq.f32.partialorder %v1994, 0.0
        %v2124 = vand.u32 %v1994, 2147483648
        %v2125 = vsel %vm2123, %v2124, %v2122
        %v2126 = vrsqrt.pop %v1995
        %v2127 = vmul.f32 %v1995, %v2126
        %vm2128 = vcmp.eq.f32.partialorder %v1995, inf
        %v2129 = vsel %vm2128, %v1995, %v2127
        %vm2130 = vcmp.eq.f32.partialorder %v1995, 0.0
        %v2131 = vand.u32 %v1995, 2147483648
        %v2132 = vsel %vm2130, %v2131, %v2129
        %v2133 = vrsqrt.pop %v1996
        %v2134 = vmul.f32 %v1996, %v2133
        %vm2135 = vcmp.eq.f32.partialorder %v1996, inf
        %v2136 = vsel %vm2135, %v1996, %v2134
        %vm2137 = vcmp.eq.f32.partialorder %v1996, 0.0
        %v2138 = vand.u32 %v1996, 2147483648
        %v2139 = vsel %vm2137, %v2138, %v2136
        %v2140 = vrsqrt.pop %v1997
        %v2141 = vmul.f32 %v1997, %v2140
        %vm2142 = vcmp.eq.f32.partialorder %v1997, inf
        %v2143 = vsel %vm2142, %v1997, %v2141
        %vm2144 = vcmp.eq.f32.partialorder %v1997, 0.0
        %v2145 = vand.u32 %v1997, 2147483648
        %v2146 = vsel %vm2144, %v2145, %v2143
        %v2147 = vrsqrt.pop %v1998
        %v2148 = vmul.f32 %v1998, %v2147
        %vm2149 = vcmp.eq.f32.partialorder %v1998, inf
        %v2150 = vsel %vm2149, %v1998, %v2148
        %vm2151 = vcmp.eq.f32.partialorder %v1998, 0.0
        %v2152 = vand.u32 %v1998, 2147483648
        %v2153 = vsel %vm2151, %v2152, %v2150
        %v2154 = vrsqrt.pop %v1999
        %v2155 = vmul.f32 %v1999, %v2154
        %vm2156 = vcmp.eq.f32.partialorder %v1999, inf
        %v2157 = vsel %vm2156, %v1999, %v2155
        %vm2158 = vcmp.eq.f32.partialorder %v1999, 0.0
        %v2159 = vand.u32 %v1999, 2147483648
        %v2160 = vsel %vm2158, %v2159, %v2157
        %v2161 = vstv %s1344
        %v2162 = vsub.f32 %v2006, %v2161
        %v2163 = vsub.f32 %v2013, %v2161
        %v2164 = vsub.f32 %v2020, %v2161
        %v2165 = vsub.f32 %v2027, %v2161
        %v2166 = vsub.f32 %v2034, %v2161
        %v2167 = vsub.f32 %v2041, %v2161
        %v2168 = vsub.f32 %v2048, %v2161
        %v2169 = vsub.f32 %v2055, %v2161
        %v2170 = vsub.f32 %v2062, %v2161
        %v2171 = vsub.f32 %v2069, %v2161
        %v2172 = vsub.f32 %v2076, %v2161
        %v2173 = vsub.f32 %v2083, %v2161
        %v2174 = vsub.f32 %v2090, %v2161
        %v2175 = vsub.f32 %v2097, %v2161
        %v2176 = vsub.f32 %v2104, %v2161
        %v2177 = vsub.f32 %v2111, %v2161
        %v2178 = vsub.f32 %v2118, %v2161
        %v2179 = vsub.f32 %v2125, %v2161
        %v2180 = vsub.f32 %v2132, %v2161
        %v2181 = vsub.f32 %v2139, %v2161
        %v2182 = vsub.f32 %v2146, %v2161
        %v2183 = vsub.f32 %v2153, %v2161
        %v2184 = vsub.f32 %v2160, %v2161
        %v2185 = vmul.f32 %v2162, %v2162
        %v2186 = vmul.f32 %v2163, %v2163
        %v2187 = vmul.f32 %v2164, %v2164
        %v2188 = vmul.f32 %v2165, %v2165
        %v2189 = vmul.f32 %v2166, %v2166
        %v2190 = vmul.f32 %v2167, %v2167
        %v2191 = vmul.f32 %v2168, %v2168
        %v2192 = vmul.f32 %v2169, %v2169
        %v2193 = vmul.f32 %v2170, %v2170
        %v2194 = vmul.f32 %v2171, %v2171
        %v2195 = vmul.f32 %v2172, %v2172
        %v2196 = vmul.f32 %v2173, %v2173
        %v2197 = vmul.f32 %v2174, %v2174
        %v2198 = vmul.f32 %v2175, %v2175
        %v2199 = vmul.f32 %v2176, %v2176
        %v2200 = vmul.f32 %v2177, %v2177
        %v2201 = vmul.f32 %v2178, %v2178
        %v2202 = vmul.f32 %v2179, %v2179
        %v2203 = vmul.f32 %v2180, %v2180
        %v2204 = vmul.f32 %v2181, %v2181
        %v2205 = vmul.f32 %v2182, %v2182
        %v2206 = vmul.f32 %v2183, %v2183
        %v2207 = vmul.f32 %v2184, %v2184
        %v2208 = vsub.f32 0.0, %v2185
        %v2209 = vsub.f32 0.0, %v2186
        %v2210 = vsub.f32 0.0, %v2187
        %v2211 = vsub.f32 0.0, %v2188
        %v2212 = vsub.f32 0.0, %v2189
        %v2213 = vsub.f32 0.0, %v2190
        %v2214 = vsub.f32 0.0, %v2191
        %v2215 = vsub.f32 0.0, %v2192
        %v2216 = vsub.f32 0.0, %v2193
        %v2217 = vsub.f32 0.0, %v2194
        %v2218 = vsub.f32 0.0, %v2195
        %v2219 = vsub.f32 0.0, %v2196
        %v2220 = vsub.f32 0.0, %v2197
        %v2221 = vsub.f32 0.0, %v2198
        %v2222 = vsub.f32 0.0, %v2199
        %v2223 = vsub.f32 0.0, %v2200
        %v2224 = vsub.f32 0.0, %v2201
        %v2225 = vsub.f32 0.0, %v2202
        %v2226 = vsub.f32 0.0, %v2203
        %v2227 = vsub.f32 0.0, %v2204
        %v2228 = vsub.f32 0.0, %v2205
        %v2229 = vsub.f32 0.0, %v2206
        %v2230 = vsub.f32 0.0, %v2207
        %v2231 = vstv %s1345
        %v2232 = vmul.f32 %v2208, %v2231
        %v2233 = vmul.f32 %v2209, %v2231
        %v2234 = vmul.f32 %v2210, %v2231
        %v2235 = vmul.f32 %v2211, %v2231
        %v2236 = vmul.f32 %v2212, %v2231
        %v2237 = vmul.f32 %v2213, %v2231
        %v2238 = vmul.f32 %v2214, %v2231
        %v2239 = vmul.f32 %v2215, %v2231
        %v2240 = vmul.f32 %v2216, %v2231
        %v2241 = vmul.f32 %v2217, %v2231
        %v2242 = vmul.f32 %v2218, %v2231
        %v2243 = vmul.f32 %v2219, %v2231
        %v2244 = vmul.f32 %v2220, %v2231
        %v2245 = vmul.f32 %v2221, %v2231
        %v2246 = vmul.f32 %v2222, %v2231
        %v2247 = vmul.f32 %v2223, %v2231
        %v2248 = vmul.f32 %v2224, %v2231
        %v2249 = vmul.f32 %v2225, %v2231
        %v2250 = vmul.f32 %v2226, %v2231
        %v2251 = vmul.f32 %v2227, %v2231
        %v2252 = vmul.f32 %v2228, %v2231
        %v2253 = vmul.f32 %v2229, %v2231
        %v2254 = vmul.f32 %v2230, %v2231
        %v2255 = vmul.f32 %v2232, 1.442695
        %v2256 = vpow.pop %v2255
        %v2257 = vmul.f32 %v2233, 1.442695
        %v2258 = vpow.pop %v2257
        %v2259 = vmul.f32 %v2234, 1.442695
        %v2260 = vpow.pop %v2259
        %v2261 = vmul.f32 %v2235, 1.442695
        %v2262 = vpow.pop %v2261
        %v2263 = vmul.f32 %v2236, 1.442695
        %v2264 = vpow.pop %v2263
        %v2265 = vmul.f32 %v2237, 1.442695
        %v2266 = vpow.pop %v2265
        %v2267 = vmul.f32 %v2238, 1.442695
        %v2268 = vpow.pop %v2267
        %v2269 = vmul.f32 %v2239, 1.442695
        %v2270 = vpow.pop %v2269
        %v2271 = vmul.f32 %v2240, 1.442695
        %v2272 = vpow.pop %v2271
        %v2273 = vmul.f32 %v2241, 1.442695
        %v2274 = vpow.pop %v2273
        %v2275 = vmul.f32 %v2242, 1.442695
        %v2276 = vpow.pop %v2275
        %v2277 = vmul.f32 %v2243, 1.442695
        %v2278 = vpow.pop %v2277
        %v2279 = vmul.f32 %v2244, 1.442695
        %v2280 = vpow.pop %v2279
        %v2281 = vmul.f32 %v2245, 1.442695
        %v2282 = vpow.pop %v2281
        %v2283 = vmul.f32 %v2246, 1.442695
        %v2284 = vpow.pop %v2283
        %v2285 = vmul.f32 %v2247, 1.442695
        %v2286 = vpow.pop %v2285
        %v2287 = vmul.f32 %v2248, 1.442695
        %v2288 = vpow.pop %v2287
        %v2289 = vmul.f32 %v2249, 1.442695
        %v2290 = vpow.pop %v2289
        %v2291 = vmul.f32 %v2250, 1.442695
        %v2292 = vpow.pop %v2291
        %v2293 = vmul.f32 %v2251, 1.442695
        %v2294 = vpow.pop %v2293
        %v2295 = vmul.f32 %v2252, 1.442695
        %v2296 = vpow.pop %v2295
        %v2297 = vmul.f32 %v2253, 1.442695
        %v2298 = vpow.pop %v2297
        %v2299 = vmul.f32 %v2254, 1.442695
        %v2300 = vpow.pop %v2299
        %2302 = vset.pattern.permute.xlu0 0
        %2303 = vperm.xlu0 %2302, %v1342
        %v2304 = vpop.permute.xlu0 %2303
        %v2306 = vmul.f32 %v1354, %v2304
        %v2307 = vmul.f32 %v1355, %v2304
        %v2308 = vmul.f32 %v1356, %v2304
        %v2309 = vmul.f32 %v1357, %v2304
        %v2310 = vmul.f32 %v1358, %v2304
        %v2311 = vmul.f32 %v1359, %v2304
        %v2312 = vmul.f32 %v1360, %v2304
        %v2313 = vmul.f32 %v1361, %v2304
        %v2314 = vmul.f32 %v1362, %v2304
        %v2315 = vmul.f32 %v1363, %v2304
        %v2316 = vmul.f32 %v1364, %v2304
        %v2317 = vmul.f32 %v1365, %v2304
        %v2318 = vmul.f32 %v1366, %v2304
        %v2319 = vmul.f32 %v1367, %v2304
        %v2320 = vmul.f32 %v1368, %v2304
        %v2321 = vmul.f32 %v1369, %v2304
        %v2322 = vmul.f32 %v1370, %v2304
        %v2323 = vmul.f32 %v1371, %v2304
        %v2324 = vmul.f32 %v1372, %v2304
        %v2325 = vmul.f32 %v1373, %v2304
        %v2326 = vmul.f32 %v1374, %v2304
        %v2327 = vmul.f32 %v1375, %v2304
        %v2328 = vmul.f32 %v1376, %v2304
        %v2329 = vrot.slane %v2306, 4
        %v2330 = vadd.f32 %v2306, %v2329
        %v2331 = vrot.slane %v2330, 2
        %v2332 = vadd.f32 %v2330, %v2331
        %v2333 = vrot.slane %v2332, 1
        %v2334 = vadd.f32 %v2332, %v2333
        %v2335 = vrot.slane %v2307, 4
        %v2336 = vadd.f32 %v2307, %v2335
        %v2337 = vrot.slane %v2336, 2
        %v2338 = vadd.f32 %v2336, %v2337
        %v2339 = vrot.slane %v2338, 1
        %v2340 = vadd.f32 %v2338, %v2339
        %v2341 = vrot.slane %v2308, 4
        %v2342 = vadd.f32 %v2308, %v2341
        %v2343 = vrot.slane %v2342, 2
        %v2344 = vadd.f32 %v2342, %v2343
        %v2345 = vrot.slane %v2344, 1
        %v2346 = vadd.f32 %v2344, %v2345
        %v2347 = vrot.slane %v2309, 4
        %v2348 = vadd.f32 %v2309, %v2347
        %v2349 = vrot.slane %v2348, 2
        %v2350 = vadd.f32 %v2348, %v2349
        %v2351 = vrot.slane %v2350, 1
        %v2352 = vadd.f32 %v2350, %v2351
        %v2353 = vrot.slane %v2310, 4
        %v2354 = vadd.f32 %v2310, %v2353
        %v2355 = vrot.slane %v2354, 2
        %v2356 = vadd.f32 %v2354, %v2355
        %v2357 = vrot.slane %v2356, 1
        %v2358 = vadd.f32 %v2356, %v2357
        %v2359 = vrot.slane %v2311, 4
        %v2360 = vadd.f32 %v2311, %v2359
        %v2361 = vrot.slane %v2360, 2
        %v2362 = vadd.f32 %v2360, %v2361
        %v2363 = vrot.slane %v2362, 1
        %v2364 = vadd.f32 %v2362, %v2363
        %v2365 = vrot.slane %v2312, 4
        %v2366 = vadd.f32 %v2312, %v2365
        %v2367 = vrot.slane %v2366, 2
        %v2368 = vadd.f32 %v2366, %v2367
        %v2369 = vrot.slane %v2368, 1
        %v2370 = vadd.f32 %v2368, %v2369
        %v2371 = vrot.slane %v2313, 4
        %v2372 = vadd.f32 %v2313, %v2371
        %v2373 = vrot.slane %v2372, 2
        %v2374 = vadd.f32 %v2372, %v2373
        %v2375 = vrot.slane %v2374, 1
        %v2376 = vadd.f32 %v2374, %v2375
        %v2377 = vrot.slane %v2314, 4
        %v2378 = vadd.f32 %v2314, %v2377
        %v2379 = vrot.slane %v2378, 2
        %v2380 = vadd.f32 %v2378, %v2379
        %v2381 = vrot.slane %v2380, 1
        %v2382 = vadd.f32 %v2380, %v2381
        %v2383 = vrot.slane %v2315, 4
        %v2384 = vadd.f32 %v2315, %v2383
        %v2385 = vrot.slane %v2384, 2
        %v2386 = vadd.f32 %v2384, %v2385
        %v2387 = vrot.slane %v2386, 1
        %v2388 = vadd.f32 %v2386, %v2387
        %v2389 = vrot.slane %v2316, 4
        %v2390 = vadd.f32 %v2316, %v2389
        %v2391 = vrot.slane %v2390, 2
        %v2392 = vadd.f32 %v2390, %v2391
        %v2393 = vrot.slane %v2392, 1
        %v2394 = vadd.f32 %v2392, %v2393
        %v2395 = vrot.slane %v2317, 4
        %v2396 = vadd.f32 %v2317, %v2395
        %v2397 = vrot.slane %v2396, 2
        %v2398 = vadd.f32 %v2396, %v2397
        %v2399 = vrot.slane %v2398, 1
        %v2400 = vadd.f32 %v2398, %v2399
        %v2401 = vrot.slane %v2318, 4
        %v2402 = vadd.f32 %v2318, %v2401
        %v2403 = vrot.slane %v2402, 2
        %v2404 = vadd.f32 %v2402, %v2403
        %v2405 = vrot.slane %v2404, 1
        %v2406 = vadd.f32 %v2404, %v2405
        %v2407 = vrot.slane %v2319, 4
        %v2408 = vadd.f32 %v2319, %v2407
        %v2409 = vrot.slane %v2408, 2
        %v2410 = vadd.f32 %v2408, %v2409
        %v2411 = vrot.slane %v2410, 1
        %v2412 = vadd.f32 %v2410, %v2411
        %v2413 = vrot.slane %v2320, 4
        %v2414 = vadd.f32 %v2320, %v2413
        %v2415 = vrot.slane %v2414, 2
        %v2416 = vadd.f32 %v2414, %v2415
        %v2417 = vrot.slane %v2416, 1
        %v2418 = vadd.f32 %v2416, %v2417
        %v2419 = vrot.slane %v2321, 4
        %v2420 = vadd.f32 %v2321, %v2419
        %v2421 = vrot.slane %v2420, 2
        %v2422 = vadd.f32 %v2420, %v2421
        %v2423 = vrot.slane %v2422, 1
        %v2424 = vadd.f32 %v2422, %v2423
        %v2425 = vrot.slane %v2322, 4
        %v2426 = vadd.f32 %v2322, %v2425
        %v2427 = vrot.slane %v2426, 2
        %v2428 = vadd.f32 %v2426, %v2427
        %v2429 = vrot.slane %v2428, 1
        %v2430 = vadd.f32 %v2428, %v2429
        %v2431 = vrot.slane %v2323, 4
        %v2432 = vadd.f32 %v2323, %v2431
        %v2433 = vrot.slane %v2432, 2
        %v2434 = vadd.f32 %v2432, %v2433
        %v2435 = vrot.slane %v2434, 1
        %v2436 = vadd.f32 %v2434, %v2435
        %v2437 = vrot.slane %v2324, 4
        %v2438 = vadd.f32 %v2324, %v2437
        %v2439 = vrot.slane %v2438, 2
        %v2440 = vadd.f32 %v2438, %v2439
        %v2441 = vrot.slane %v2440, 1
        %v2442 = vadd.f32 %v2440, %v2441
        %v2443 = vrot.slane %v2325, 4
        %v2444 = vadd.f32 %v2325, %v2443
        %v2445 = vrot.slane %v2444, 2
        %v2446 = vadd.f32 %v2444, %v2445
        %v2447 = vrot.slane %v2446, 1
        %v2448 = vadd.f32 %v2446, %v2447
        %v2449 = vrot.slane %v2326, 4
        %v2450 = vadd.f32 %v2326, %v2449
        %v2451 = vrot.slane %v2450, 2
        %v2452 = vadd.f32 %v2450, %v2451
        %v2453 = vrot.slane %v2452, 1
        %v2454 = vadd.f32 %v2452, %v2453
        %v2455 = vrot.slane %v2327, 4
        %v2456 = vadd.f32 %v2327, %v2455
        %v2457 = vrot.slane %v2456, 2
        %v2458 = vadd.f32 %v2456, %v2457
        %v2459 = vrot.slane %v2458, 1
        %v2460 = vadd.f32 %v2458, %v2459
        %v2461 = vrot.slane %v2328, 4
        %v2462 = vadd.f32 %v2328, %v2461
        %v2463 = vrot.slane %v2462, 2
        %v2464 = vadd.f32 %v2462, %v2463
        %v2465 = vrot.slane %v2464, 1
        %v2466 = vadd.f32 %v2464, %v2465
        %v2467 = vsub.f32 %v2334, %v1700
        %v2468 = vsub.f32 %v2340, %v1701
        %v2469 = vsub.f32 %v2346, %v1702
        %v2470 = vsub.f32 %v2352, %v1703
        %v2471 = vsub.f32 %v2358, %v1704
        %v2472 = vsub.f32 %v2364, %v1705
        %v2473 = vsub.f32 %v2370, %v1706
        %v2474 = vsub.f32 %v2376, %v1707
        %v2475 = vsub.f32 %v2382, %v1708
        %v2476 = vsub.f32 %v2388, %v1709
        %v2477 = vsub.f32 %v2394, %v1710
        %v2478 = vsub.f32 %v2400, %v1711
        %v2479 = vsub.f32 %v2406, %v1712
        %v2480 = vsub.f32 %v2412, %v1713
        %v2481 = vsub.f32 %v2418, %v1714
        %v2482 = vsub.f32 %v2424, %v1715
        %v2483 = vsub.f32 %v2430, %v1716
        %v2484 = vsub.f32 %v2436, %v1717
        %v2485 = vsub.f32 %v2442, %v1718
        %v2486 = vsub.f32 %v2448, %v1719
        %v2487 = vsub.f32 %v2454, %v1720
        %v2488 = vsub.f32 %v2460, %v1721
        %v2489 = vsub.f32 %v2466, %v1722
        %v2490 = vstv %s1348
        %v2491 = vsub.f32 %v2467, %v2490
        %v2492 = vsub.f32 %v2468, %v2490
        %v2493 = vsub.f32 %v2469, %v2490
        %v2494 = vsub.f32 %v2470, %v2490
        %v2495 = vsub.f32 %v2471, %v2490
        %v2496 = vsub.f32 %v2472, %v2490
        %v2497 = vsub.f32 %v2473, %v2490
        %v2498 = vsub.f32 %v2474, %v2490
        %v2499 = vsub.f32 %v2475, %v2490
        %v2500 = vsub.f32 %v2476, %v2490
        %v2501 = vsub.f32 %v2477, %v2490
        %v2502 = vsub.f32 %v2478, %v2490
        %v2503 = vsub.f32 %v2479, %v2490
        %v2504 = vsub.f32 %v2480, %v2490
        %v2505 = vsub.f32 %v2481, %v2490
        %v2506 = vsub.f32 %v2482, %v2490
        %v2507 = vsub.f32 %v2483, %v2490
        %v2508 = vsub.f32 %v2484, %v2490
        %v2509 = vsub.f32 %v2485, %v2490
        %v2510 = vsub.f32 %v2486, %v2490
        %v2511 = vsub.f32 %v2487, %v2490
        %v2512 = vsub.f32 %v2488, %v2490
        %v2513 = vsub.f32 %v2489, %v2490
        %v2514 = vmul.f32 %v2491, 1.442695
        %v2515 = vpow.pop %v2514
        %v2516 = vmul.f32 %v2492, 1.442695
        %v2517 = vpow.pop %v2516
        %v2518 = vmul.f32 %v2493, 1.442695
        %v2519 = vpow.pop %v2518
        %v2520 = vmul.f32 %v2494, 1.442695
        %v2521 = vpow.pop %v2520
        %v2522 = vmul.f32 %v2495, 1.442695
        %v2523 = vpow.pop %v2522
        %v2524 = vmul.f32 %v2496, 1.442695
        %v2525 = vpow.pop %v2524
        %v2526 = vmul.f32 %v2497, 1.442695
        %v2527 = vpow.pop %v2526
        %v2528 = vmul.f32 %v2498, 1.442695
        %v2529 = vpow.pop %v2528
        %v2530 = vmul.f32 %v2499, 1.442695
        %v2531 = vpow.pop %v2530
        %v2532 = vmul.f32 %v2500, 1.442695
        %v2533 = vpow.pop %v2532
        %v2534 = vmul.f32 %v2501, 1.442695
        %v2535 = vpow.pop %v2534
        %v2536 = vmul.f32 %v2502, 1.442695
        %v2537 = vpow.pop %v2536
        %v2538 = vmul.f32 %v2503, 1.442695
        %v2539 = vpow.pop %v2538
        %v2540 = vmul.f32 %v2504, 1.442695
        %v2541 = vpow.pop %v2540
        %v2542 = vmul.f32 %v2505, 1.442695
        %v2543 = vpow.pop %v2542
        %v2544 = vmul.f32 %v2506, 1.442695
        %v2545 = vpow.pop %v2544
        %v2546 = vmul.f32 %v2507, 1.442695
        %v2547 = vpow.pop %v2546
        %v2548 = vmul.f32 %v2508, 1.442695
        %v2549 = vpow.pop %v2548
        %v2550 = vmul.f32 %v2509, 1.442695
        %v2551 = vpow.pop %v2550
        %v2552 = vmul.f32 %v2510, 1.442695
        %v2553 = vpow.pop %v2552
        %v2554 = vmul.f32 %v2511, 1.442695
        %v2555 = vpow.pop %v2554
        %v2556 = vmul.f32 %v2512, 1.442695
        %v2557 = vpow.pop %v2556
        %v2558 = vmul.f32 %v2513, 1.442695
        %v2559 = vpow.pop %v2558
        %v2560 = vstv %s1346
        %v2561 = vmul.f32 %v2560, %v2256
        %v2562 = vmul.f32 %v2560, %v2258
        %v2563 = vmul.f32 %v2560, %v2260
        %v2564 = vmul.f32 %v2560, %v2262
        %v2565 = vmul.f32 %v2560, %v2264
        %v2566 = vmul.f32 %v2560, %v2266
        %v2567 = vmul.f32 %v2560, %v2268
        %v2568 = vmul.f32 %v2560, %v2270
        %v2569 = vmul.f32 %v2560, %v2272
        %v2570 = vmul.f32 %v2560, %v2274
        %v2571 = vmul.f32 %v2560, %v2276
        %v2572 = vmul.f32 %v2560, %v2278
        %v2573 = vmul.f32 %v2560, %v2280
        %v2574 = vmul.f32 %v2560, %v2282
        %v2575 = vmul.f32 %v2560, %v2284
        %v2576 = vmul.f32 %v2560, %v2286
        %v2577 = vmul.f32 %v2560, %v2288
        %v2578 = vmul.f32 %v2560, %v2290
        %v2579 = vmul.f32 %v2560, %v2292
        %v2580 = vmul.f32 %v2560, %v2294
        %v2581 = vmul.f32 %v2560, %v2296
        %v2582 = vmul.f32 %v2560, %v2298
        %v2583 = vmul.f32 %v2560, %v2300
        %v2584 = vstv %s1347
        %v2585 = vmul.f32 %v2584, %v2515
        %v2586 = vmul.f32 %v2584, %v2517
        %v2587 = vmul.f32 %v2584, %v2519
        %v2588 = vmul.f32 %v2584, %v2521
        %v2589 = vmul.f32 %v2584, %v2523
        %v2590 = vmul.f32 %v2584, %v2525
        %v2591 = vmul.f32 %v2584, %v2527
        %v2592 = vmul.f32 %v2584, %v2529
        %v2593 = vmul.f32 %v2584, %v2531
        %v2594 = vmul.f32 %v2584, %v2533
        %v2595 = vmul.f32 %v2584, %v2535
        %v2596 = vmul.f32 %v2584, %v2537
        %v2597 = vmul.f32 %v2584, %v2539
        %v2598 = vmul.f32 %v2584, %v2541
        %v2599 = vmul.f32 %v2584, %v2543
        %v2600 = vmul.f32 %v2584, %v2545
        %v2601 = vmul.f32 %v2584, %v2547
        %v2602 = vmul.f32 %v2584, %v2549
        %v2603 = vmul.f32 %v2584, %v2551
        %v2604 = vmul.f32 %v2584, %v2553
        %v2605 = vmul.f32 %v2584, %v2555
        %v2606 = vmul.f32 %v2584, %v2557
        %v2607 = vmul.f32 %v2584, %v2559
        %v2608 = vadd.f32 %v2561, %v2585
        %v2609 = vadd.f32 %v2562, %v2586
        %v2610 = vadd.f32 %v2563, %v2587
        %v2611 = vadd.f32 %v2564, %v2588
        %v2612 = vadd.f32 %v2565, %v2589
        %v2613 = vadd.f32 %v2566, %v2590
        %v2614 = vadd.f32 %v2567, %v2591
        %v2615 = vadd.f32 %v2568, %v2592
        %v2616 = vadd.f32 %v2569, %v2593
        %v2617 = vadd.f32 %v2570, %v2594
        %v2618 = vadd.f32 %v2571, %v2595
        %v2619 = vadd.f32 %v2572, %v2596
        %v2620 = vadd.f32 %v2573, %v2597
        %v2621 = vadd.f32 %v2574, %v2598
        %v2622 = vadd.f32 %v2575, %v2599
        %v2623 = vadd.f32 %v2576, %v2600
        %v2624 = vadd.f32 %v2577, %v2601
        %v2625 = vadd.f32 %v2578, %v2602
        %v2626 = vadd.f32 %v2579, %v2603
        %v2627 = vadd.f32 %v2580, %v2604
        %v2628 = vadd.f32 %v2581, %v2605
        %v2629 = vadd.f32 %v2582, %v2606
        %v2630 = vadd.f32 %v2583, %v2607
        %v2654 = vcombine.low %v2608, %v2609
        %v2655 = vcombine.low %v2610, %v2611
        %v2656 = vcombine.low %v2612, %v2613
        %v2657 = vcombine.low %v2614, %v2615
        %v2659 = vunpack.c.l.s4 1966171168
        %v2660 = vunpack.c.0.s8 %v2659
        %v2661 = vlaneseq
        %v2662 = vshrl.u32 %v2661, 7
        %v2663 = vsub.s32 %v2660, %v2662
        %v2664 = vrot.slane %v2654, %v2663
        %v2666 = vunpack.c.l.s4 1966171168
        %v2667 = vunpack.c.0.s8 %v2666
        %v2668 = vlaneseq
        %v2669 = vshrl.u32 %v2668, 7
        %v2670 = vsub.s32 %v2667, %v2669
        %v2671 = vrot.slane %v2655, %v2670
        %v2673 = vunpack.c.l.s4 1966171168
        %v2674 = vunpack.c.0.s8 %v2673
        %v2675 = vlaneseq
        %v2676 = vshrl.u32 %v2675, 7
        %v2677 = vsub.s32 %v2674, %v2676
        %v2678 = vrot.slane %v2656, %v2677
        %v2680 = vunpack.c.l.s4 1966171168
        %v2681 = vunpack.c.0.s8 %v2680
        %v2682 = vlaneseq
        %v2683 = vshrl.u32 %v2682, 7
        %v2684 = vsub.s32 %v2681, %v2683
        %v2685 = vrot.slane %v2657, %v2684
        %v2686 = vcombine.low %v2664, %v2671
        %v2687 = vcombine.low %v2678, %v2685
        %v2689 = vunpack.c.l.s4 1966171168
        %v2690 = vunpack.c.0.s8 %v2689
        %v2691 = vlaneseq
        %v2692 = vshrl.u32 %v2691, 7
        %v2693 = vsub.s32 %v2690, %v2692
        %v2694 = vrot.slane %v2686, %v2693
        %v2696 = vunpack.c.l.s4 1966171168
        %v2697 = vunpack.c.0.s8 %v2696
        %v2698 = vlaneseq
        %v2699 = vshrl.u32 %v2698, 7
        %v2700 = vsub.s32 %v2697, %v2699
        %v2701 = vrot.slane %v2687, %v2700
        %v2702 = vcombine.low %v2694, %v2701
        %v2703 = vcombine.low %v2616, %v2617
        %v2704 = vcombine.low %v2618, %v2619
        %v2705 = vcombine.low %v2620, %v2621
        %v2706 = vcombine.low %v2622, %v2623
        %v2708 = vunpack.c.l.s4 1966171168
        %v2709 = vunpack.c.0.s8 %v2708
        %v2710 = vlaneseq
        %v2711 = vshrl.u32 %v2710, 7
        %v2712 = vsub.s32 %v2709, %v2711
        %v2713 = vrot.slane %v2703, %v2712
        %v2715 = vunpack.c.l.s4 1966171168
        %v2716 = vunpack.c.0.s8 %v2715
        %v2717 = vlaneseq
        %v2718 = vshrl.u32 %v2717, 7
        %v2719 = vsub.s32 %v2716, %v2718
        %v2720 = vrot.slane %v2704, %v2719
        %v2722 = vunpack.c.l.s4 1966171168
        %v2723 = vunpack.c.0.s8 %v2722
        %v2724 = vlaneseq
        %v2725 = vshrl.u32 %v2724, 7
        %v2726 = vsub.s32 %v2723, %v2725
        %v2727 = vrot.slane %v2705, %v2726
        %v2729 = vunpack.c.l.s4 1966171168
        %v2730 = vunpack.c.0.s8 %v2729
        %v2731 = vlaneseq
        %v2732 = vshrl.u32 %v2731, 7
        %v2733 = vsub.s32 %v2730, %v2732
        %v2734 = vrot.slane %v2706, %v2733
        %v2735 = vcombine.low %v2713, %v2720
        %v2736 = vcombine.low %v2727, %v2734
        %v2738 = vunpack.c.l.s4 1966171168
        %v2739 = vunpack.c.0.s8 %v2738
        %v2740 = vlaneseq
        %v2741 = vshrl.u32 %v2740, 7
        %v2742 = vsub.s32 %v2739, %v2741
        %v2743 = vrot.slane %v2735, %v2742
        %v2745 = vunpack.c.l.s4 1966171168
        %v2746 = vunpack.c.0.s8 %v2745
        %v2747 = vlaneseq
        %v2748 = vshrl.u32 %v2747, 7
        %v2749 = vsub.s32 %v2746, %v2748
        %v2750 = vrot.slane %v2736, %v2749
        %v2751 = vcombine.low %v2743, %v2750
        %v2752 = vcombine.low %v2624, %v2625
        %v2753 = vcombine.low %v2626, %v2627
        %v2754 = vcombine.low %v2628, %v2629
        %v2756 = vunpack.c.l.s4 1966171168
        %v2757 = vunpack.c.0.s8 %v2756
        %v2758 = vlaneseq
        %v2759 = vshrl.u32 %v2758, 7
        %v2760 = vsub.s32 %v2757, %v2759
        %v2761 = vrot.slane %v2752, %v2760
        %v2763 = vunpack.c.l.s4 1966171168
        %v2764 = vunpack.c.0.s8 %v2763
        %v2765 = vlaneseq
        %v2766 = vshrl.u32 %v2765, 7
        %v2767 = vsub.s32 %v2764, %v2766
        %v2768 = vrot.slane %v2753, %v2767
        %v2770 = vunpack.c.l.s4 1966171168
        %v2771 = vunpack.c.0.s8 %v2770
        %v2772 = vlaneseq
        %v2773 = vshrl.u32 %v2772, 7
        %v2774 = vsub.s32 %v2771, %v2773
        %v2775 = vrot.slane %v2754, %v2774
        %v2777 = vunpack.c.l.s4 1966171168
        %v2778 = vunpack.c.0.s8 %v2777
        %v2779 = vlaneseq
        %v2780 = vshrl.u32 %v2779, 7
        %v2781 = vsub.s32 %v2778, %v2780
        %v2782 = vrot.slane %v2630, %v2781
        %v2783 = vcombine.low %v2761, %v2768
        %v2784 = vcombine.low %v2775, %v2782
        %v2786 = vunpack.c.l.s4 1966171168
        %v2787 = vunpack.c.0.s8 %v2786
        %v2788 = vlaneseq
        %v2789 = vshrl.u32 %v2788, 7
        %v2790 = vsub.s32 %v2787, %v2789
        %v2791 = vrot.slane %v2783, %v2790
        %v2793 = vunpack.c.l.s4 1966171168
        %v2794 = vunpack.c.0.s8 %v2793
        %v2795 = vlaneseq
        %v2796 = vshrl.u32 %v2795, 7
        %v2797 = vsub.s32 %v2794, %v2796
        %v2798 = vrot.slane %v2784, %v2797
        %v2799 = vcombine.low %v2791, %v2798
        %2803 = vst [vmem:[%s217] sm:$0xff] %v2702
        %2804 = vst [vmem:[%s217 + $0x8] sm:$0xff] %v2751
        %v2805 = vlaneseq
        %vm2806 = vcmp.ge.s32.totalorder %v2805, 0
        %vm2807 = vcmp.lt.s32.totalorder %v2805, 896
        %vm2808 = vmand %vm2806, %vm2807
        %2809 = vst.msk [vmem:[%s217 + $0x10] sm:$0x7f] %vm2808, %v2799
        %s2810 = sand.u32 %s116, 1
        %s2811 = scalar_lea.sflag [#allocation3], %s2810
        %s2812 = sand.u32 %s116, 1
        %s2813 = smul.addr %s2812, 23
        %s2814 = scalar_lea.vmem [#allocation5], %s2813
        // Predicated region
        $region41: #{toroidal_splat_forward.1} parent=35 // pred_check
          %p2815 = pneg %p126
        $region42: #{toroidal_splat_forward.1} parent=35 // pred_check_branch
          %2817 = sbr.rel (%p2815) target = $region44
        $region43: #{toroidal_splat_forward.1} parent=35 // pred_region
          %s2818 = smul.u32 23, %s19
          %s2819 = ssub.s32 24, %s2818
          %p2820 = scmp.lt.s32.totalorder %s2819, 23
          %s2821 = scalar_select %p2820, %s2819, 23
          %s2822 = smul.u32 16, %s2821
          %s2824 = ssub.s32 368, %s2822
          %2825 = vsyncadd %s2811, %s2824
          %p2826 = scmp.ne.s32.totalorder 0, %s2822
          %s2827 = smul.addr %s2818, 16
          %s2828 = scalar_lea.hbm %s4, %s2827
          %s2829 = sshll.u32 %s2821, 4
          %s2830 = sshll.u32 %s2814, 4
          %s2831 = int_to_ptr.vmem [resolvable:$true] %s2830
          %2833 = dma.vmem_to_hbm [thread:$0]  (%p2826), %s2831, %s2829, %s2828, %s2811
        $region44: #{toroidal_splat_forward.1} parent=35 // pred_fallthru
          _
      $region36: #{toroidal_splat_forward.1} parent=5 // pred_fallthru
        _
      %p2834 = scmp.le.s32.totalorder 2, %s14
      // Predicated region
      $region45: #{toroidal_splat_forward.1} parent=5 // pred_check
        %p2835 = pneg %p2834
      $region46: #{toroidal_splat_forward.1} parent=5 // pred_check_branch
        %2837 = sbr.rel (%p2835) target = $region48
      $region47: #{toroidal_splat_forward.1} parent=5 // pred_region
        %s2838 = ssub.s32 %s14, 2
        // Predicated region
        $region49: #{toroidal_splat_forward.1} parent=47 // pred_check
          %p2839 = pneg %p132
        $region50: #{toroidal_splat_forward.1} parent=47 // pred_check_branch
          %2841 = sbr.rel (%p2839) target = $region52
        $region51: #{toroidal_splat_forward.1} parent=47 // pred_region
          %s2842 = sand.u32 %s117, 1
          %s2843 = scalar_lea.sflag [#allocation3], %s2842
          %s2844 = sand.u32 %s117, 1
          %s2845 = smul.addr %s2844, 23
          %s2846 = scalar_lea.vmem [#allocation5], %s2845
          %2847 = dma.done %s2843, 368
        $region52: #{toroidal_splat_forward.1} parent=47 // pred_fallthru
          _
      $region48: #{toroidal_splat_forward.1} parent=5 // pred_fallthru
        _
    $region6: #{toroidal_splat_forward.1} parent=1 // loop_footer
      %s18 = sadd.s32 1, %s14
    $region7: #{toroidal_splat_forward.1} parent=1 // loop_footer_branch
      %13 = sbr.rel target = $region3
    $region8: #{toroidal_splat_forward.1} parent=1 // loop_exit
      _
    %2848 = vsyncpa [#allocation3], 1
    %s2849 = scalar_lea.sflag [#allocation3], 1
    %2850 = vsyncpa %s2849, 1
    %2851 = vsyncpa [#allocation4], 1
    %s2852 = scalar_lea.sflag [#allocation4], 1
    %2853 = vsyncpa %s2852, 1

</llo_original>
